<compile_context>
chip_gen: v7x
topology: tpu7x:2x2x1
jax: 0.10.0
libtpu: 0.0.40
codegen_flags: <defaults>
</compile_context>

<pallas_src>
import functools

import jax
import jax.numpy as jnp
from jax import lax
from jax.experimental import pallas as pl
from jax.experimental.pallas import tpu as pltpu


# ---------------------------------------------------------------------------
# Fused Pallas kernel (lane-dense / transposed layout):
#   out(C, TM) = [relu?]( W(C,K) @ P(K,TM) + bias(C,1) ) [+res] [relu?] [+res2]
# ---------------------------------------------------------------------------
def _make_kernel(relu_first, has_res, relu_last, has_res2):
    def kernel(*refs):
        w_ref, p_ref, b_ref = refs[0], refs[1], refs[2]
        i = 3
        r_ref = r2_ref = None
        if has_res:
            r_ref = refs[i]
            i += 1
        if has_res2:
            r2_ref = refs[i]
            i += 1
        o_ref = refs[i]

        y = jnp.dot(w_ref[...], p_ref[...], preferred_element_type=jnp.float32)
        y = y + b_ref[...]                     # folded BatchNorm bias (+conv bias)
        if relu_first:
            y = jnp.maximum(y, 0.0)
        if has_res:
            y = y + r_ref[...]                 # residual / skip add
        if relu_last:
            y = jnp.maximum(y, 0.0)
        if has_res2:
            y = y + r2_ref[...]                # post-activation skip add
        o_ref[...] = y.astype(o_ref.dtype)

    return kernel


def fused_matmul(w_mat, patches_t, bias, res=None, res2=None,
                 relu_first=True, relu_last=False):
    """w_mat: (C, K) f32 (BN scale already folded in), patches_t: (K, M) f32,
    bias: (C,). Returns (C, M) f32.  M (pixels) is the lane dimension."""
    C, Kdim = w_mat.shape
    M = patches_t.shape[1]

    # 1 or 2 grid steps only; >=2 lets v7x's two TensorCores split the work.
    if M > 256 and (M // 2) % 128 == 0:
        TM = M // 2
    else:
        TM = M
    grid = (M // TM,)

    # bf16 MXU inputs, f32 accumulation.
    w_bf = w_mat.astype(jnp.bfloat16)
    p_bf = patches_t.astype(jnp.bfloat16)
    b2 = bias.reshape(C, 1).astype(jnp.float32)

    in_specs = [
        pl.BlockSpec((C, Kdim), lambda i: (0, 0)),   # weights resident
        pl.BlockSpec((Kdim, TM), lambda i: (0, i)),
        pl.BlockSpec((C, 1), lambda i: (0, 0)),
    ]
    args = [w_bf, p_bf, b2]
    if res is not None:
        in_specs.append(pl.BlockSpec((C, TM), lambda i: (0, i)))
        args.append(res.astype(jnp.float32))
    if res2 is not None:
        in_specs.append(pl.BlockSpec((C, TM), lambda i: (0, i)))
        args.append(res2.astype(jnp.float32))

    kernel = _make_kernel(relu_first, res is not None, relu_last, res2 is not None)

    return pl.pallas_call(
        kernel,
        out_shape=jax.ShapeDtypeStruct((C, M), jnp.float32),
        grid_spec=pltpu.PrefetchScalarGridSpec(
            num_scalar_prefetch=0,
            grid=grid,
            in_specs=in_specs,
            out_specs=pl.BlockSpec((C, TM), lambda i: (0, i)),
        ),
        compiler_params=pltpu.CompilerParams(dimension_semantics=("parallel",)),
    )(*args)


# ---------------------------------------------------------------------------
# im2col (transposed layout) — 3x3 window, stride 1, zero pad 1
# ---------------------------------------------------------------------------
def _im2col3_t(x_cnhw):
    """x: (C, N, H, W) -> (9*C, N*H*W); rows ordered (ty, tx, ci)."""
    Cc, N, H, W = x_cnhw.shape
    xp = jnp.pad(x_cnhw, ((0, 0), (0, 0), (1, 1), (1, 1)))
    taps = []
    for ty in range(3):
        for tx in range(3):
            taps.append(xp[:, :, ty:ty + H, tx:tx + W].reshape(Cc, N * H * W))
    return jnp.concatenate(taps, axis=0)


# ---------------------------------------------------------------------------
# Decoder blocks (activations kept in CNHW layout between kernels)
# ---------------------------------------------------------------------------
def convt_block(x_cnhw, p, skip=None):
    """ConvTranspose2d(K=4, s=2, p=1) + folded BN + ReLU [+ fused skip add],
    lowered as 4 sub-pixel phases sharing one dense 3x3-window matmul."""
    Cin, N, H, W = x_cnhw.shape
    Cout = p['wmat'].shape[0] // 4
    M = N * H * W
    patches = _im2col3_t(x_cnhw)                         # (9*Cin, M), dense
    r = None
    if skip is not None:
        # skip (Cout, N, 2H, 2W) -> phase layout (4*Cout, M), rows (a, b, co)
        r = jnp.transpose(skip.reshape(Cout, N, H, 2, W, 2),
                          (3, 5, 0, 1, 2, 4)).reshape(4 * Cout, M)
    out = fused_matmul(p['wmat'], patches, p['bias'], res=r, relu_first=True)
    # un-shuffle phases: (a, b, co, n, m, l) -> (co, n, 2m+a, 2l+b)
    out = out.reshape(2, 2, Cout, N, H, W)
    out = jnp.transpose(out, (2, 3, 4, 0, 5, 1)).reshape(Cout, N, 2 * H, 2 * W)
    return out


def residual_block(x_cnhw, p, skip=None):
    """relu(x + BN(conv2(relu(BN(conv1(x)))))) with optional fused post-ReLU
    skip add (the `x + skips[i]` of the Decoder forward)."""
    C, N, H, W = x_cnhw.shape
    M = N * H * W
    x_flat = x_cnhw.reshape(C, M)
    t = fused_matmul(p['w1'], _im2col3_t(x_cnhw), p['b1'], relu_first=True)
    r2 = None if skip is None else skip.reshape(C, M)
    out = fused_matmul(p['w2'], _im2col3_t(t.reshape(C, N, H, W)), p['b2'],
                       res=x_flat, res2=r2, relu_first=False, relu_last=True)
    return out.reshape(C, N, H, W)


def decoder_forward(x_nchw, skips_nchw, prep):
    """Matches PyTorch: d5(d4(d3(d2(d1(x)+s3)+s2)+s1)+s0); NCHW in/out."""
    to_cnhw = lambda a: jnp.transpose(a, (1, 0, 2, 3))
    x = to_cnhw(x_nchw)
    skips = [to_cnhw(s) for s in skips_nchw]
    h = convt_block(x, prep['d1'], skip=skips[3])        # d1(x) + skips[3]
    h = residual_block(h, prep['d2'], skip=skips[2])     # d2(.) + skips[2]
    h = convt_block(h, prep['d3'], skip=skips[1])        # d3(.) + skips[1]
    h = residual_block(h, prep['d4'], skip=skips[0])     # d4(.) + skips[0]
    h = convt_block(h, prep['d5'], skip=None)            # d5(.)
    return jnp.transpose(h, (1, 0, 2, 3))


# ---------------------------------------------------------------------------
# Parameter init (deterministic, synthetic), BN folding, kernel-ready prep
# ---------------------------------------------------------------------------
def fold_bn(conv_bias, gamma, beta, mean, var, eps=1e-5):
    scale = gamma / jnp.sqrt(var + eps)
    bias = beta + scale * (conv_bias - mean)
    return scale, bias


def init_raw_params(key, F, out_ch, K):
    keys = iter(jax.random.split(key, 64))

    def nrm(shape, s=0.1):
        return s * jax.random.normal(next(keys), shape, jnp.float32)

    def bn(c):
        gamma = 1.0 + 0.1 * jax.random.normal(next(keys), (c,), jnp.float32)
        beta = 0.1 * jax.random.normal(next(keys), (c,), jnp.float32)
        mean = 0.05 * jax.random.normal(next(keys), (c,), jnp.float32)
        var = 1.0 + 0.1 * jnp.abs(jax.random.normal(next(keys), (c,), jnp.float32))
        return gamma, beta, mean, var

    def convt(cin, cout):
        w = nrm((cin, cout, K, K))            # PyTorch ConvTranspose2d layout
        b = nrm((cout,))
        s, bb = fold_bn(b, *bn(cout))
        return dict(w=w, s=s, b=bb)

    def resblk(c):
        w1, b1 = nrm((c, c, 3, 3)), nrm((c,))
        s1, bb1 = fold_bn(b1, *bn(c))
        w2, b2 = nrm((c, c, 3, 3)), nrm((c,))
        s2, bb2 = fold_bn(b2, *bn(c))
        return dict(w1=w1, s1=s1, b1=bb1, w2=w2, s2=s2, b2=bb2)

    return dict(d1=convt(4 * F, 2 * F), d2=resblk(2 * F),
                d3=convt(2 * F, F), d4=resblk(F),
                d5=convt(F, out_ch))


# phase a -> [(window_row ty in 3x3 window, ConvT kernel row ky), ...]
_CT_TAPS = (((1, 1), (0, 3)), ((2, 0), (1, 2)))


def _prep_convt(raw, K, stride, pad):
    # Sub-pixel lowering is specialized to the standard 2x-upsampling ConvT.
    assert (K, stride, pad) == (4, 2, 1)
    w, scale, bias = raw['w'], raw['s'], raw['b']     # w: (Cin, Cout, 4, 4)
    Cin, Cout = w.shape[0], w.shape[1]
    wf = jnp.zeros((2, 2, 3, 3, Cin, Cout), jnp.float32)
    for a in range(2):
        for b in range(2):
            for ty, ky in _CT_TAPS[a]:
                for tx, kx in _CT_TAPS[b]:
                    wf = wf.at[a, b, ty, tx].set(w[:, :, ky, kx])
    wmat = jnp.transpose(wf, (0, 1, 5, 2, 3, 4)).reshape(4 * Cout, 9 * Cin)
    wmat = wmat * jnp.tile(scale, 4)[:, None]         # fold BN scale into W
    return dict(wmat=wmat, bias=jnp.tile(bias, 4))


def _prep_conv3(w, scale, bias):
    Cout, Cin = w.shape[0], w.shape[1]
    wmat = jnp.transpose(w, (0, 2, 3, 1)).reshape(Cout, 9 * Cin) * scale[:, None]
    return wmat, bias


def prepare_params(raw, K, stride, pad):
    prep = {}
    for name in ('d1', 'd3', 'd5'):
        prep[name] = _prep_convt(raw[name], K, stride, pad)
    for name in ('d2', 'd4'):
        r = raw[name]
        w1, b1 = _prep_conv3(r['w1'], r['s1'], r['b1'])
        w2, b2 = _prep_conv3(r['w2'], r['s2'], r['b2'])
        prep[name] = dict(w1=w1, b1=b1, w2=w2, b2=b2)
    return prep


# ---------------------------------------------------------------------------
# Pure-JAX (lax conv) reference for correctness checking
# ---------------------------------------------------------------------------
def _ref_convt(x, raw, K, stride, pad):
    wf = jnp.transpose(raw['w'], (1, 0, 2, 3))[:, :, ::-1, ::-1]
    y = lax.conv_general_dilated(
        x, wf, window_strides=(1, 1),
        padding=[(K - 1 - pad, K - 1 - pad)] * 2, lhs_dilation=(stride, stride),
        dimension_numbers=('NCHW', 'OIHW', 'NCHW'),
        precision=lax.Precision.HIGHEST)
    y = y * raw['s'].reshape(1, -1, 1, 1) + raw['b'].reshape(1, -1, 1, 1)
    return jnp.maximum(y, 0.0)


def _ref_conv3(x, w):
    return lax.conv_general_dilated(
        x, w, window_strides=(1, 1), padding=[(1, 1), (1, 1)],
        dimension_numbers=('NCHW', 'OIHW', 'NCHW'),
        precision=lax.Precision.HIGHEST)


def _ref_resblock(x, raw):
    t = jnp.maximum(_ref_conv3(x, raw['w1']) * raw['s1'].reshape(1, -1, 1, 1)
                    + raw['b1'].reshape(1, -1, 1, 1), 0.0)
    y = (_ref_conv3(t, raw['w2']) * raw['s2'].reshape(1, -1, 1, 1)
         + raw['b2'].reshape(1, -1, 1, 1))
    return jnp.maximum(x + y, 0.0)


def decoder_reference(x, skips, raw, K, stride, pad):
    h = _ref_convt(x, raw['d1'], K, stride, pad) + skips[3]
    h = _ref_resblock(h, raw['d2']) + skips[2]
    h = _ref_convt(h, raw['d3'], K, stride, pad) + skips[1]
    h = _ref_resblock(h, raw['d4']) + skips[0]
    h = _ref_convt(h, raw['d5'], K, stride, pad)
    return h


# ---------------------------------------------------------------------------
if __name__ == "__main__":
    # config: num_filters=4, out_channels=3, kernel_size=4, stride=2, padding=1
    F, OUT_CH, K, STRIDE, PAD = 4, 3, 4, 2, 1
    N, S = 2, 4                                   # batch, bottleneck spatial

    key = jax.random.PRNGKey(0)
    kx, k0, k1, k2, k3, kp = jax.random.split(key, 6)
    x = jax.random.normal(kx, (N, 4 * F, S, S), jnp.float32)          # (2,16,4,4)
    skips = [
        jax.random.normal(k0, (N, F, 4 * S, 4 * S), jnp.float32),     # (2,4,16,16)
        jax.random.normal(k1, (N, F, 4 * S, 4 * S), jnp.float32),     # (2,4,16,16)
        jax.random.normal(k2, (N, 2 * F, 2 * S, 2 * S), jnp.float32),  # (2,8,8,8)
        jax.random.normal(k3, (N, 2 * F, 2 * S, 2 * S), jnp.float32),  # (2,8,8,8)
    ]
    raw = init_raw_params(kp, F, OUT_CH, K)
    prep = prepare_params(raw, K, STRIDE, PAD)

    fwd = jax.jit(decoder_forward)
    out = jax.block_until_ready(fwd(x, skips, prep))
    assert out.shape == (N, OUT_CH, 8 * S, 8 * S), out.shape
    assert bool(jnp.all(jnp.isfinite(out)))

    # correctness vs. a high-precision lax conv reference (bf16 MXU tolerance)
    ref_fn = jax.jit(functools.partial(decoder_reference, K=K, stride=STRIDE, pad=PAD))
    ref = jax.block_until_ready(ref_fn(x, skips, raw))
    err = float(jnp.max(jnp.abs(out - ref)) / (jnp.max(jnp.abs(ref)) + 1e-6))
    assert err < 0.05, f"mismatch vs reference: normalized max err {err}"

    print("KERNEL_OK")
</pallas_src>

<mosaic_0001>
module attributes {stable_mosaic.version = 11 : i64} {
  func.func @kernel(%arg0: i32, %arg1: memref<32x144xbf16, #tpu.memory_space<vmem>>, %arg2: memref<144x32xbf16, #tpu.memory_space<vmem>>, %arg3: memref<32x1xf32, #tpu.memory_space<vmem>>, %arg4: memref<32x32xf32, #tpu.memory_space<vmem>>, %arg5: memref<32x32xf32, #tpu.memory_space<vmem>>) attributes {dimension_semantics = [#tpu.dimension_semantics<parallel>], iteration_bounds = array<i64: 1>, scalar_prefetch = 0 : i64, scratch_operands = 0 : i64, tpu.core_type = #tpu.core_type<tc>, window_params = [{pipeline_mode = #tpu.pipeline_mode<synchronous>, transform_indices = @transform_0, window_bounds = array<i64: 32, 144>}, {transform_indices = @transform_1, window_bounds = array<i64: 144, 32>}, {pipeline_mode = #tpu.pipeline_mode<synchronous>, transform_indices = @transform_2, window_bounds = array<i64: 32, 1>}, {transform_indices = @transform_3, window_bounds = array<i64: 32, 32>}, {transform_indices = @transform_4, window_bounds = array<i64: 32, 32>}]} {
    %c0 = arith.constant 0 : index
    %c0_0 = arith.constant 0 : index
    %0 = vector.load %arg1[%c0, %c0_0] : memref<32x144xbf16, #tpu.memory_space<vmem>>, vector<32x144xbf16>
    %c0_1 = arith.constant 0 : index
    %c0_2 = arith.constant 0 : index
    %1 = vector.load %arg2[%c0_1, %c0_2] : memref<144x32xbf16, #tpu.memory_space<vmem>>, vector<144x32xbf16>
    %cst = arith.constant dense<0.000000e+00> : vector<32x32xf32>
    %2 = tpu.matmul %0, %1, %cst {dimension_numbers = #tpu.dot_dimension_numbers<[1], [0], [0], [1], [0, 0, 1, 1], [], []>} : vector<32x144xbf16>, vector<144x32xbf16>, vector<32x32xf32> -> vector<32x32xf32>
    %c0_3 = arith.constant 0 : index
    %c0_4 = arith.constant 0 : index
    %3 = vector.load %arg3[%c0_3, %c0_4] : memref<32x1xf32, #tpu.memory_space<vmem>>, vector<32x1xf32>
    %4 = vector.broadcast %3 : vector<32x1xf32> to vector<32x32xf32>
    %5 = arith.addf %2, %4 : vector<32x32xf32>
    %cst_5 = arith.constant 0.000000e+00 : f32
    %6 = vector.broadcast %cst_5 : f32 to vector<32x32xf32>
    %7 = arith.maximumf %5, %6 : vector<32x32xf32>
    %c0_6 = arith.constant 0 : index
    %c0_7 = arith.constant 0 : index
    %8 = vector.load %arg4[%c0_6, %c0_7] : memref<32x32xf32, #tpu.memory_space<vmem>>, vector<32x32xf32>
    %9 = arith.addf %7, %8 : vector<32x32xf32>
    %c0_8 = arith.constant 0 : index
    %c0_9 = arith.constant 0 : index
    %10 = vector.load %arg5[%c0_8, %c0_9] : memref<32x32xf32, #tpu.memory_space<vmem>>, vector<32x32xf32>
    tpu.vector_store %arg5[%c0_8, %c0_9], %9 {strides = array<i32>} : memref<32x32xf32, #tpu.memory_space<vmem>>, vector<32x32xf32>,
    return
  }
  func.func @transform_0(%arg0: i32) -> (i32, i32) {
    %c0_i32 = arith.constant 0 : i32
    %c0_i32_0 = arith.constant 0 : i32
    %c0_i32_1 = arith.constant 0 : i32
    return %c0_i32, %c0_i32_0 : i32, i32
  }
  func.func @transform_1(%arg0: i32) -> (i32, i32) {
    %c0_i32 = arith.constant 0 : i32
    %c0_i32_0 = arith.constant 0 : i32
    return %c0_i32, %arg0 : i32, i32
  }
  func.func @transform_2(%arg0: i32) -> (i32, i32) {
    %c0_i32 = arith.constant 0 : i32
    %c0_i32_0 = arith.constant 0 : i32
    %c0_i32_1 = arith.constant 0 : i32
    return %c0_i32, %c0_i32_0 : i32, i32
  }
  func.func @transform_3(%arg0: i32) -> (i32, i32) {
    %c0_i32 = arith.constant 0 : i32
    %c0_i32_0 = arith.constant 0 : i32
    return %c0_i32, %arg0 : i32, i32
  }
  func.func @transform_4(%arg0: i32) -> (i32, i32) {
    %c0_i32 = arith.constant 0 : i32
    %c0_i32_0 = arith.constant 0 : i32
    return %c0_i32, %arg0 : i32, i32
  }
}

module attributes {stable_mosaic.version = 11 : i64} {
  func.func @kernel(%arg0: i32, %arg1: memref<8x72xbf16, #tpu.memory_space<vmem>>, %arg2: memref<72x128xbf16, #tpu.memory_space<vmem>>, %arg3: memref<8x1xf32, #tpu.memory_space<vmem>>, %arg4: memref<8x128xf32, #tpu.memory_space<vmem>>) attributes {dimension_semantics = [#tpu.dimension_semantics<parallel>], iteration_bounds = array<i64: 1>, scalar_prefetch = 0 : i64, scratch_operands = 0 : i64, tpu.core_type = #tpu.core_type<tc>, window_params = [{pipeline_mode = #tpu.pipeline_mode<synchronous>, transform_indices = @transform_0, window_bounds = array<i64: 8, 72>}, {transform_indices = @transform_1, window_bounds = array<i64: 72, 128>}, {pipeline_mode = #tpu.pipeline_mode<synchronous>, transform_indices = @transform_2, window_bounds = array<i64: 8, 1>}, {transform_indices = @transform_3, window_bounds = array<i64: 8, 128>}]} {
    %c0 = arith.constant 0 : index
    %c0_0 = arith.constant 0 : index
    %0 = vector.load %arg1[%c0, %c0_0] : memref<8x72xbf16, #tpu.memory_space<vmem>>, vector<8x72xbf16>
    %c0_1 = arith.constant 0 : index
    %c0_2 = arith.constant 0 : index
    %1 = vector.load %arg2[%c0_1, %c0_2] : memref<72x128xbf16, #tpu.memory_space<vmem>>, vector<72x128xbf16>
    %cst = arith.constant dense<0.000000e+00> : vector<8x128xf32>
    %2 = tpu.matmul %0, %1, %cst {dimension_numbers = #tpu.dot_dimension_numbers<[1], [0], [0], [1], [0, 0, 1, 1], [], []>} : vector<8x72xbf16>, vector<72x128xbf16>, vector<8x128xf32> -> vector<8x128xf32>
    %c0_3 = arith.constant 0 : index
    %c0_4 = arith.constant 0 : index
    %3 = vector.load %arg3[%c0_3, %c0_4] : memref<8x1xf32, #tpu.memory_space<vmem>>, vector<8x1xf32>
    %4 = vector.broadcast %3 : vector<8x1xf32> to vector<8x128xf32>
    %5 = arith.addf %2, %4 : vector<8x128xf32>
    %cst_5 = arith.constant 0.000000e+00 : f32
    %6 = vector.broadcast %cst_5 : f32 to vector<8x128xf32>
    %7 = arith.maximumf %5, %6 : vector<8x128xf32>
    %c0_6 = arith.constant 0 : index
    %c0_7 = arith.constant 0 : index
    %8 = vector.load %arg4[%c0_6, %c0_7] : memref<8x128xf32, #tpu.memory_space<vmem>>, vector<8x128xf32>
    tpu.vector_store %arg4[%c0_6, %c0_7], %7 {strides = array<i32>} : memref<8x128xf32, #tpu.memory_space<vmem>>, vector<8x128xf32>,
    return
  }
  func.func @transform_0(%arg0: i32) -> (i32, i32) {
    %c0_i32 = arith.constant 0 : i32
    %c0_i32_0 = arith.constant 0 : i32
    %c0_i32_1 = arith.constant 0 : i32
    return %c0_i32, %c0_i32_0 : i32, i32
  }
  func.func @transform_1(%arg0: i32) -> (i32, i32) {
    %c0_i32 = arith.constant 0 : i32
    %c0_i32_0 = arith.constant 0 : i32
    return %c0_i32, %arg0 : i32, i32
  }
  func.func @transform_2(%arg0: i32) -> (i32, i32) {
    %c0_i32 = arith.constant 0 : i32
    %c0_i32_0 = arith.constant 0 : i32
    %c0_i32_1 = arith.constant 0 : i32
    return %c0_i32, %c0_i32_0 : i32, i32
  }
  func.func @transform_3(%arg0: i32) -> (i32, i32) {
    %c0_i32 = arith.constant 0 : i32
    %c0_i32_0 = arith.constant 0 : i32
    return %c0_i32, %arg0 : i32, i32
  }
}

module attributes {stable_mosaic.version = 11 : i64} {
  func.func @kernel(%arg0: i32, %arg1: memref<8x72xbf16, #tpu.memory_space<vmem>>, %arg2: memref<72x128xbf16, #tpu.memory_space<vmem>>, %arg3: memref<8x1xf32, #tpu.memory_space<vmem>>, %arg4: memref<8x128xf32, #tpu.memory_space<vmem>>, %arg5: memref<8x128xf32, #tpu.memory_space<vmem>>, %arg6: memref<8x128xf32, #tpu.memory_space<vmem>>) attributes {dimension_semantics = [#tpu.dimension_semantics<parallel>], iteration_bounds = array<i64: 1>, scalar_prefetch = 0 : i64, scratch_operands = 0 : i64, tpu.core_type = #tpu.core_type<tc>, window_params = [{pipeline_mode = #tpu.pipeline_mode<synchronous>, transform_indices = @transform_0, window_bounds = array<i64: 8, 72>}, {transform_indices = @transform_1, window_bounds = array<i64: 72, 128>}, {pipeline_mode = #tpu.pipeline_mode<synchronous>, transform_indices = @transform_2, window_bounds = array<i64: 8, 1>}, {transform_indices = @transform_3, window_bounds = array<i64: 8, 128>}, {transform_indices = @transform_4, window_bounds = array<i64: 8, 128>}, {transform_indices = @transform_5, window_bounds = array<i64: 8, 128>}]} {
    %c0 = arith.constant 0 : index
    %c0_0 = arith.constant 0 : index
    %0 = vector.load %arg1[%c0, %c0_0] : memref<8x72xbf16, #tpu.memory_space<vmem>>, vector<8x72xbf16>
    %c0_1 = arith.constant 0 : index
    %c0_2 = arith.constant 0 : index
    %1 = vector.load %arg2[%c0_1, %c0_2] : memref<72x128xbf16, #tpu.memory_space<vmem>>, vector<72x128xbf16>
    %cst = arith.constant dense<0.000000e+00> : vector<8x128xf32>
    %2 = tpu.matmul %0, %1, %cst {dimension_numbers = #tpu.dot_dimension_numbers<[1], [0], [0], [1], [0, 0, 1, 1], [], []>} : vector<8x72xbf16>, vector<72x128xbf16>, vector<8x128xf32> -> vector<8x128xf32>
    %c0_3 = arith.constant 0 : index
    %c0_4 = arith.constant 0 : index
    %3 = vector.load %arg3[%c0_3, %c0_4] : memref<8x1xf32, #tpu.memory_space<vmem>>, vector<8x1xf32>
    %4 = vector.broadcast %3 : vector<8x1xf32> to vector<8x128xf32>
    %5 = arith.addf %2, %4 : vector<8x128xf32>
    %c0_5 = arith.constant 0 : index
    %c0_6 = arith.constant 0 : index
    %6 = vector.load %arg4[%c0_5, %c0_6] : memref<8x128xf32, #tpu.memory_space<vmem>>, vector<8x128xf32>
    %7 = arith.addf %5, %6 : vector<8x128xf32>
    %cst_7 = arith.constant 0.000000e+00 : f32
    %8 = vector.broadcast %cst_7 : f32 to vector<8x128xf32>
    %9 = arith.maximumf %7, %8 : vector<8x128xf32>
    %c0_8 = arith.constant 0 : index
    %c0_9 = arith.constant 0 : index
    %10 = vector.load %arg5[%c0_8, %c0_9] : memref<8x128xf32, #tpu.memory_space<vmem>>, vector<8x128xf32>
    %11 = arith.addf %9, %10 : vector<8x128xf32>
    %c0_10 = arith.constant 0 : index
    %c0_11 = arith.constant 0 : index
    %12 = vector.load %arg6[%c0_10, %c0_11] : memref<8x128xf32, #tpu.memory_space<vmem>>, vector<8x128xf32>
    tpu.vector_store %arg6[%c0_10, %c0_11], %11 {strides = array<i32>} : memref<8x128xf32, #tpu.memory_space<vmem>>, vector<8x128xf32>,
    return
  }
  func.func @transform_0(%arg0: i32) -> (i32, i32) {
    %c0_i32 = arith.constant 0 : i32
    %c0_i32_0 = arith.constant 0 : i32
    %c0_i32_1 = arith.constant 0 : i32
    return %c0_i32, %c0_i32_0 : i32, i32
  }
  func.func @transform_1(%arg0: i32) -> (i32, i32) {
    %c0_i32 = arith.constant 0 : i32
    %c0_i32_0 = arith.constant 0 : i32
    return %c0_i32, %arg0 : i32, i32
  }
  func.func @transform_2(%arg0: i32) -> (i32, i32) {
    %c0_i32 = arith.constant 0 : i32
    %c0_i32_0 = arith.constant 0 : i32
    %c0_i32_1 = arith.constant 0 : i32
    return %c0_i32, %c0_i32_0 : i32, i32
  }
  func.func @transform_3(%arg0: i32) -> (i32, i32) {
    %c0_i32 = arith.constant 0 : i32
    %c0_i32_0 = arith.constant 0 : i32
    return %c0_i32, %arg0 : i32, i32
  }
  func.func @transform_4(%arg0: i32) -> (i32, i32) {
    %c0_i32 = arith.constant 0 : i32
    %c0_i32_0 = arith.constant 0 : i32
    return %c0_i32, %arg0 : i32, i32
  }
  func.func @transform_5(%arg0: i32) -> (i32, i32) {
    %c0_i32 = arith.constant 0 : i32
    %c0_i32_0 = arith.constant 0 : i32
    return %c0_i32, %arg0 : i32, i32
  }
}

module attributes {stable_mosaic.version = 11 : i64} {
  func.func @kernel(%arg0: i32, %arg1: memref<16x72xbf16, #tpu.memory_space<vmem>>, %arg2: memref<72x128xbf16, #tpu.memory_space<vmem>>, %arg3: memref<16x1xf32, #tpu.memory_space<vmem>>, %arg4: memref<16x128xf32, #tpu.memory_space<vmem>>, %arg5: memref<16x128xf32, #tpu.memory_space<vmem>>) attributes {dimension_semantics = [#tpu.dimension_semantics<parallel>], iteration_bounds = array<i64: 1>, scalar_prefetch = 0 : i64, scratch_operands = 0 : i64, tpu.core_type = #tpu.core_type<tc>, window_params = [{pipeline_mode = #tpu.pipeline_mode<synchronous>, transform_indices = @transform_0, window_bounds = array<i64: 16, 72>}, {transform_indices = @transform_1, window_bounds = array<i64: 72, 128>}, {pipeline_mode = #tpu.pipeline_mode<synchronous>, transform_indices = @transform_2, window_bounds = array<i64: 16, 1>}, {transform_indices = @transform_3, window_bounds = array<i64: 16, 128>}, {transform_indices = @transform_4, window_bounds = array<i64: 16, 128>}]} {
    %c0 = arith.constant 0 : index
    %c0_0 = arith.constant 0 : index
    %0 = vector.load %arg1[%c0, %c0_0] : memref<16x72xbf16, #tpu.memory_space<vmem>>, vector<16x72xbf16>
    %c0_1 = arith.constant 0 : index
    %c0_2 = arith.constant 0 : index
    %1 = vector.load %arg2[%c0_1, %c0_2] : memref<72x128xbf16, #tpu.memory_space<vmem>>, vector<72x128xbf16>
    %cst = arith.constant dense<0.000000e+00> : vector<16x128xf32>
    %2 = tpu.matmul %0, %1, %cst {dimension_numbers = #tpu.dot_dimension_numbers<[1], [0], [0], [1], [0, 0, 1, 1], [], []>} : vector<16x72xbf16>, vector<72x128xbf16>, vector<16x128xf32> -> vector<16x128xf32>
    %c0_3 = arith.constant 0 : index
    %c0_4 = arith.constant 0 : index
    %3 = vector.load %arg3[%c0_3, %c0_4] : memref<16x1xf32, #tpu.memory_space<vmem>>, vector<16x1xf32>
    %4 = vector.broadcast %3 : vector<16x1xf32> to vector<16x128xf32>
    %5 = arith.addf %2, %4 : vector<16x128xf32>
    %cst_5 = arith.constant 0.000000e+00 : f32
    %6 = vector.broadcast %cst_5 : f32 to vector<16x128xf32>
    %7 = arith.maximumf %5, %6 : vector<16x128xf32>
    %c0_6 = arith.constant 0 : index
    %c0_7 = arith.constant 0 : index
    %8 = vector.load %arg4[%c0_6, %c0_7] : memref<16x128xf32, #tpu.memory_space<vmem>>, vector<16x128xf32>
    %9 = arith.addf %7, %8 : vector<16x128xf32>
    %c0_8 = arith.constant 0 : index
    %c0_9 = arith.constant 0 : index
    %10 = vector.load %arg5[%c0_8, %c0_9] : memref<16x128xf32, #tpu.memory_space<vmem>>, vector<16x128xf32>
    tpu.vector_store %arg5[%c0_8, %c0_9], %9 {strides = array<i32>} : memref<16x128xf32, #tpu.memory_space<vmem>>, vector<16x128xf32>,
    return
  }
  func.func @transform_0(%arg0: i32) -> (i32, i32) {
    %c0_i32 = arith.constant 0 : i32
    %c0_i32_0 = arith.constant 0 : i32
    %c0_i32_1 = arith.constant 0 : i32
    return %c0_i32, %c0_i32_0 : i32, i32
  }
  func.func @transform_1(%arg0: i32) -> (i32, i32) {
    %c0_i32 = arith.constant 0 : i32
    %c0_i32_0 = arith.constant 0 : i32
    return %c0_i32, %arg0 : i32, i32
  }
  func.func @transform_2(%arg0: i32) -> (i32, i32) {
    %c0_i32 = arith.constant 0 : i32
    %c0_i32_0 = arith.constant 0 : i32
    %c0_i32_1 = arith.constant 0 : i32
    return %c0_i32, %c0_i32_0 : i32, i32
  }
  func.func @transform_3(%arg0: i32) -> (i32, i32) {
    %c0_i32 = arith.constant 0 : i32
    %c0_i32_0 = arith.constant 0 : i32
    return %c0_i32, %arg0 : i32, i32
  }
  func.func @transform_4(%arg0: i32) -> (i32, i32) {
    %c0_i32 = arith.constant 0 : i32
    %c0_i32_0 = arith.constant 0 : i32
    return %c0_i32, %arg0 : i32, i32
  }
}

module attributes {stable_mosaic.version = 11 : i64} {
  func.func @kernel(%arg0: i32, %arg1: memref<4x36xbf16, #tpu.memory_space<vmem>>, %arg2: memref<36x256xbf16, #tpu.memory_space<vmem>>, %arg3: memref<4x1xf32, #tpu.memory_space<vmem>>, %arg4: memref<4x256xf32, #tpu.memory_space<vmem>>) attributes {dimension_semantics = [#tpu.dimension_semantics<parallel>], iteration_bounds = array<i64: 2>, scalar_prefetch = 0 : i64, scratch_operands = 0 : i64, tpu.core_type = #tpu.core_type<tc>, window_params = [{pipeline_mode = #tpu.pipeline_mode<synchronous>, transform_indices = @transform_0, window_bounds = array<i64: 4, 36>}, {transform_indices = @transform_1, window_bounds = array<i64: 36, 256>}, {pipeline_mode = #tpu.pipeline_mode<synchronous>, transform_indices = @transform_2, window_bounds = array<i64: 4, 1>}, {transform_indices = @transform_3, window_bounds = array<i64: 4, 256>}]} {
    %c0 = arith.constant 0 : index
    %c0_0 = arith.constant 0 : index
    %0 = vector.load %arg1[%c0, %c0_0] : memref<4x36xbf16, #tpu.memory_space<vmem>>, vector<4x36xbf16>
    %c0_1 = arith.constant 0 : index
    %c0_2 = arith.constant 0 : index
    %1 = vector.load %arg2[%c0_1, %c0_2] : memref<36x256xbf16, #tpu.memory_space<vmem>>, vector<36x256xbf16>
    %cst = arith.constant dense<0.000000e+00> : vector<4x256xf32>
    %2 = tpu.matmul %0, %1, %cst {dimension_numbers = #tpu.dot_dimension_numbers<[1], [0], [0], [1], [0, 0, 1, 1], [], []>} : vector<4x36xbf16>, vector<36x256xbf16>, vector<4x256xf32> -> vector<4x256xf32>
    %c0_3 = arith.constant 0 : index
    %c0_4 = arith.constant 0 : index
    %3 = vector.load %arg3[%c0_3, %c0_4] : memref<4x1xf32, #tpu.memory_space<vmem>>, vector<4x1xf32>
    %4 = vector.broadcast %3 : vector<4x1xf32> to vector<4x256xf32>
    %5 = arith.addf %2, %4 : vector<4x256xf32>
    %cst_5 = arith.constant 0.000000e+00 : f32
    %6 = vector.broadcast %cst_5 : f32 to vector<4x256xf32>
    %7 = arith.maximumf %5, %6 : vector<4x256xf32>
    %c0_6 = arith.constant 0 : index
    %c0_7 = arith.constant 0 : index
    %8 = vector.load %arg4[%c0_6, %c0_7] : memref<4x256xf32, #tpu.memory_space<vmem>>, vector<4x256xf32>
    tpu.vector_store %arg4[%c0_6, %c0_7], %7 {strides = array<i32>} : memref<4x256xf32, #tpu.memory_space<vmem>>, vector<4x256xf32>,
    return
  }
  func.func @transform_0(%arg0: i32) -> (i32, i32) {
    %c0_i32 = arith.constant 0 : i32
    %c0_i32_0 = arith.constant 0 : i32
    %c0_i32_1 = arith.constant 0 : i32
    return %c0_i32, %c0_i32_0 : i32, i32
  }
  func.func @transform_1(%arg0: i32) -> (i32, i32) {
    %c0_i32 = arith.constant 0 : i32
    %c0_i32_0 = arith.constant 0 : i32
    return %c0_i32, %arg0 : i32, i32
  }
  func.func @transform_2(%arg0: i32) -> (i32, i32) {
    %c0_i32 = arith.constant 0 : i32
    %c0_i32_0 = arith.constant 0 : i32
    %c0_i32_1 = arith.constant 0 : i32
    return %c0_i32, %c0_i32_0 : i32, i32
  }
  func.func @transform_3(%arg0: i32) -> (i32, i32) {
    %c0_i32 = arith.constant 0 : i32
    %c0_i32_0 = arith.constant 0 : i32
    return %c0_i32, %arg0 : i32, i32
  }
}

module attributes {stable_mosaic.version = 11 : i64} {
  func.func @kernel(%arg0: i32, %arg1: memref<4x36xbf16, #tpu.memory_space<vmem>>, %arg2: memref<36x256xbf16, #tpu.memory_space<vmem>>, %arg3: memref<4x1xf32, #tpu.memory_space<vmem>>, %arg4: memref<4x256xf32, #tpu.memory_space<vmem>>, %arg5: memref<4x256xf32, #tpu.memory_space<vmem>>, %arg6: memref<4x256xf32, #tpu.memory_space<vmem>>) attributes {dimension_semantics = [#tpu.dimension_semantics<parallel>], iteration_bounds = array<i64: 2>, scalar_prefetch = 0 : i64, scratch_operands = 0 : i64, tpu.core_type = #tpu.core_type<tc>, window_params = [{pipeline_mode = #tpu.pipeline_mode<synchronous>, transform_indices = @transform_0, window_bounds = array<i64: 4, 36>}, {transform_indices = @transform_1, window_bounds = array<i64: 36, 256>}, {pipeline_mode = #tpu.pipeline_mode<synchronous>, transform_indices = @transform_2, window_bounds = array<i64: 4, 1>}, {transform_indices = @transform_3, window_bounds = array<i64: 4, 256>}, {transform_indices = @transform_4, window_bounds = array<i64: 4, 256>}, {transform_indices = @transform_5, window_bounds = array<i64: 4, 256>}]} {
    %c0 = arith.constant 0 : index
    %c0_0 = arith.constant 0 : index
    %0 = vector.load %arg1[%c0, %c0_0] : memref<4x36xbf16, #tpu.memory_space<vmem>>, vector<4x36xbf16>
    %c0_1 = arith.constant 0 : index
    %c0_2 = arith.constant 0 : index
    %1 = vector.load %arg2[%c0_1, %c0_2] : memref<36x256xbf16, #tpu.memory_space<vmem>>, vector<36x256xbf16>
    %cst = arith.constant dense<0.000000e+00> : vector<4x256xf32>
    %2 = tpu.matmul %0, %1, %cst {dimension_numbers = #tpu.dot_dimension_numbers<[1], [0], [0], [1], [0, 0, 1, 1], [], []>} : vector<4x36xbf16>, vector<36x256xbf16>, vector<4x256xf32> -> vector<4x256xf32>
    %c0_3 = arith.constant 0 : index
    %c0_4 = arith.constant 0 : index
    %3 = vector.load %arg3[%c0_3, %c0_4] : memref<4x1xf32, #tpu.memory_space<vmem>>, vector<4x1xf32>
    %4 = vector.broadcast %3 : vector<4x1xf32> to vector<4x256xf32>
    %5 = arith.addf %2, %4 : vector<4x256xf32>
    %c0_5 = arith.constant 0 : index
    %c0_6 = arith.constant 0 : index
    %6 = vector.load %arg4[%c0_5, %c0_6] : memref<4x256xf32, #tpu.memory_space<vmem>>, vector<4x256xf32>
    %7 = arith.addf %5, %6 : vector<4x256xf32>
    %cst_7 = arith.constant 0.000000e+00 : f32
    %8 = vector.broadcast %cst_7 : f32 to vector<4x256xf32>
    %9 = arith.maximumf %7, %8 : vector<4x256xf32>
    %c0_8 = arith.constant 0 : index
    %c0_9 = arith.constant 0 : index
    %10 = vector.load %arg5[%c0_8, %c0_9] : memref<4x256xf32, #tpu.memory_space<vmem>>, vector<4x256xf32>
    %11 = arith.addf %9, %10 : vector<4x256xf32>
    %c0_10 = arith.constant 0 : index
    %c0_11 = arith.constant 0 : index
    %12 = vector.load %arg6[%c0_10, %c0_11] : memref<4x256xf32, #tpu.memory_space<vmem>>, vector<4x256xf32>
    tpu.vector_store %arg6[%c0_10, %c0_11], %11 {strides = array<i32>} : memref<4x256xf32, #tpu.memory_space<vmem>>, vector<4x256xf32>,
    return
  }
  func.func @transform_0(%arg0: i32) -> (i32, i32) {
    %c0_i32 = arith.constant 0 : i32
    %c0_i32_0 = arith.constant 0 : i32
    %c0_i32_1 = arith.constant 0 : i32
    return %c0_i32, %c0_i32_0 : i32, i32
  }
  func.func @transform_1(%arg0: i32) -> (i32, i32) {
    %c0_i32 = arith.constant 0 : i32
    %c0_i32_0 = arith.constant 0 : i32
    return %c0_i32, %arg0 : i32, i32
  }
  func.func @transform_2(%arg0: i32) -> (i32, i32) {
    %c0_i32 = arith.constant 0 : i32
    %c0_i32_0 = arith.constant 0 : i32
    %c0_i32_1 = arith.constant 0 : i32
    return %c0_i32, %c0_i32_0 : i32, i32
  }
  func.func @transform_3(%arg0: i32) -> (i32, i32) {
    %c0_i32 = arith.constant 0 : i32
    %c0_i32_0 = arith.constant 0 : i32
    return %c0_i32, %arg0 : i32, i32
  }
  func.func @transform_4(%arg0: i32) -> (i32, i32) {
    %c0_i32 = arith.constant 0 : i32
    %c0_i32_0 = arith.constant 0 : i32
    return %c0_i32, %arg0 : i32, i32
  }
  func.func @transform_5(%arg0: i32) -> (i32, i32) {
    %c0_i32 = arith.constant 0 : i32
    %c0_i32_0 = arith.constant 0 : i32
    return %c0_i32, %arg0 : i32, i32
  }
}

module attributes {stable_mosaic.version = 11 : i64} {
  func.func @kernel(%arg0: i32, %arg1: memref<12x36xbf16, #tpu.memory_space<vmem>>, %arg2: memref<36x256xbf16, #tpu.memory_space<vmem>>, %arg3: memref<12x1xf32, #tpu.memory_space<vmem>>, %arg4: memref<12x256xf32, #tpu.memory_space<vmem>>) attributes {dimension_semantics = [#tpu.dimension_semantics<parallel>], iteration_bounds = array<i64: 2>, scalar_prefetch = 0 : i64, scratch_operands = 0 : i64, tpu.core_type = #tpu.core_type<tc>, window_params = [{pipeline_mode = #tpu.pipeline_mode<synchronous>, transform_indices = @transform_0, window_bounds = array<i64: 12, 36>}, {transform_indices = @transform_1, window_bounds = array<i64: 36, 256>}, {pipeline_mode = #tpu.pipeline_mode<synchronous>, transform_indices = @transform_2, window_bounds = array<i64: 12, 1>}, {transform_indices = @transform_3, window_bounds = array<i64: 12, 256>}]} {
    %c0 = arith.constant 0 : index
    %c0_0 = arith.constant 0 : index
    %0 = vector.load %arg1[%c0, %c0_0] : memref<12x36xbf16, #tpu.memory_space<vmem>>, vector<12x36xbf16>
    %c0_1 = arith.constant 0 : index
    %c0_2 = arith.constant 0 : index
    %1 = vector.load %arg2[%c0_1, %c0_2] : memref<36x256xbf16, #tpu.memory_space<vmem>>, vector<36x256xbf16>
    %cst = arith.constant dense<0.000000e+00> : vector<12x256xf32>
    %2 = tpu.matmul %0, %1, %cst {dimension_numbers = #tpu.dot_dimension_numbers<[1], [0], [0], [1], [0, 0, 1, 1], [], []>} : vector<12x36xbf16>, vector<36x256xbf16>, vector<12x256xf32> -> vector<12x256xf32>
    %c0_3 = arith.constant 0 : index
    %c0_4 = arith.constant 0 : index
    %3 = vector.load %arg3[%c0_3, %c0_4] : memref<12x1xf32, #tpu.memory_space<vmem>>, vector<12x1xf32>
    %4 = vector.broadcast %3 : vector<12x1xf32> to vector<12x256xf32>
    %5 = arith.addf %2, %4 : vector<12x256xf32>
    %cst_5 = arith.constant 0.000000e+00 : f32
    %6 = vector.broadcast %cst_5 : f32 to vector<12x256xf32>
    %7 = arith.maximumf %5, %6 : vector<12x256xf32>
    %c0_6 = arith.constant 0 : index
    %c0_7 = arith.constant 0 : index
    %8 = vector.load %arg4[%c0_6, %c0_7] : memref<12x256xf32, #tpu.memory_space<vmem>>, vector<12x256xf32>
    tpu.vector_store %arg4[%c0_6, %c0_7], %7 {strides = array<i32>} : memref<12x256xf32, #tpu.memory_space<vmem>>, vector<12x256xf32>,
    return
  }
  func.func @transform_0(%arg0: i32) -> (i32, i32) {
    %c0_i32 = arith.constant 0 : i32
    %c0_i32_0 = arith.constant 0 : i32
    %c0_i32_1 = arith.constant 0 : i32
    return %c0_i32, %c0_i32_0 : i32, i32
  }
  func.func @transform_1(%arg0: i32) -> (i32, i32) {
    %c0_i32 = arith.constant 0 : i32
    %c0_i32_0 = arith.constant 0 : i32
    return %c0_i32, %arg0 : i32, i32
  }
  func.func @transform_2(%arg0: i32) -> (i32, i32) {
    %c0_i32 = arith.constant 0 : i32
    %c0_i32_0 = arith.constant 0 : i32
    %c0_i32_1 = arith.constant 0 : i32
    return %c0_i32, %c0_i32_0 : i32, i32
  }
  func.func @transform_3(%arg0: i32) -> (i32, i32) {
    %c0_i32 = arith.constant 0 : i32
    %c0_i32_0 = arith.constant 0 : i32
    return %c0_i32, %arg0 : i32, i32
  }
}

</mosaic_0001>

<llo_original>
// kernel: decoder_forward.7
$region0: #{decoder_forward.7}
  #allocation0 [shape = 'u32[]', space=smem, size = 0x4, offset = 0x4, fixed_abs, tag = 'smem constant byte address 0x4 - core index']
  #allocation1 [shape = 'u32[144,128]{1,0:T(1,128)}', space=vmem, size = 0x12000, scoped, tag = 'internal scratch']
  %s0 = inlined_call_operand.vmem [shape: bf16[32,144], index: 0, kind: input, shape index: {}]
  %s1 = inlined_call_operand.vmem [shape: bf16[144,32], index: 1, kind: input, shape index: {}]
  %s2 = inlined_call_operand.vmem [shape: f32[32,1], index: 2, kind: input, shape index: {}]
  %s3 = inlined_call_operand.vmem [shape: f32[32,32], index: 3, kind: input, shape index: {}]
  %s4 = inlined_call_operand.vmem [shape: f32[32,32], index: 4, kind: output, shape index: {}]
  %s5 = sld [smem:[#allocation0]]
  $region26: #{decoder_forward.7} parent=0
    _
  %s7 = ssub.s32 1, %s5
  %s8 = scalar_select 0, %s7, %s5
  // Predicated region
  $region2: #{decoder_forward.7} parent=0 // pred_check
    _
  $region3: #{decoder_forward.7} parent=0 // pred_check_branch
    %10 = sbr.rel (0) target = $region5
  $region4: #{decoder_forward.7} parent=0 // pred_region
    _
  $region5: #{decoder_forward.7} parent=0 // pred_fallthru
    _
  // Predicated region
  $region6: #{decoder_forward.7} parent=0 // pred_check
    _
  $region7: #{decoder_forward.7} parent=0 // pred_check_branch
    %12 = sbr.rel (0) target = $region9
  $region8: #{decoder_forward.7} parent=0 // pred_region
    _
  $region9: #{decoder_forward.7} parent=0 // pred_fallthru
    _
  // Predicated region
  $region10: #{decoder_forward.7} parent=0 // pred_check
    _
  $region11: #{decoder_forward.7} parent=0 // pred_check_branch
    %14 = sbr.rel (0) target = $region13
  $region12: #{decoder_forward.7} parent=0 // pred_region
    _
  $region13: #{decoder_forward.7} parent=0 // pred_fallthru
    _
  // Predicated region
  $region14: #{decoder_forward.7} parent=0 // pred_check
    _
  $region15: #{decoder_forward.7} parent=0 // pred_check_branch
    %16 = sbr.rel (0) target = $region17
  $region16: #{decoder_forward.7} parent=0 // pred_region
    _
  $region17: #{decoder_forward.7} parent=0 // pred_fallthru
    _
  %v18 = vld [vmem:[%s0] sm:$0xff]
  %v19 = vld [vmem:[%s0 + $0x8] sm:$0xff]
  %v20 = vld [vmem:[%s0 + $0x10] sm:$0xff]
  %v21 = vld [vmem:[%s0 + $0x18] sm:$0xff]
  %v22 = vld [vmem:[%s1] sm:$0xf]
  %v23 = vld [vmem:[%s1 + $0x4] sm:$0xf]
  %v24 = vld [vmem:[%s1 + $0x8] sm:$0xf]
  %v25 = vld [vmem:[%s1 + $0xc] sm:$0xf]
  %v26 = vld [vmem:[%s1 + $0x10] sm:$0xf]
  %v27 = vld [vmem:[%s1 + $0x14] sm:$0xf]
  %v28 = vld [vmem:[%s1 + $0x18] sm:$0xf]
  %v29 = vld [vmem:[%s1 + $0x1c] sm:$0xf]
  %v30 = vld [vmem:[%s1 + $0x20] sm:$0xf]
  %v31 = vld [vmem:[%s1 + $0x24] sm:$0xf]
  %v32 = vld [vmem:[%s1 + $0x28] sm:$0xf]
  %v33 = vld [vmem:[%s1 + $0x2c] sm:$0xf]
  %v34 = vld [vmem:[%s1 + $0x30] sm:$0xf]
  %v35 = vld [vmem:[%s1 + $0x34] sm:$0xf]
  %v36 = vld [vmem:[%s1 + $0x38] sm:$0xf]
  %v37 = vld [vmem:[%s1 + $0x3c] sm:$0xf]
  %v38 = vld [vmem:[%s1 + $0x40] sm:$0xf]
  %v39 = vld [vmem:[%s1 + $0x44] sm:$0xf]
  %v40 = vld [vmem:[%s2] sm:$0xff]
  %v41 = vld [vmem:[%s2 + $0x8] sm:$0xff]
  %v42 = vld [vmem:[%s2 + $0x10] sm:$0xff]
  %v43 = vld [vmem:[%s2 + $0x18] sm:$0xff]
  %45 = vset.pattern.permute.xlu0 0
  %46 = vperm.xlu0 %45, %v40
  %v47 = vpop.permute.xlu0 %46
  %50 = vset.pattern.permute.xlu0 0
  %51 = vperm.xlu0 %50, %v41
  %v52 = vpop.permute.xlu0 %51
  %55 = vset.pattern.permute.xlu0 0
  %56 = vperm.xlu0 %55, %v42
  %v57 = vpop.permute.xlu0 %56
  %60 = vset.pattern.permute.xlu0 0
  %61 = vperm.xlu0 %60, %v43
  %v62 = vpop.permute.xlu0 %61
  %v68 = vunpack.c.l.b16 %v18
  %v69 = vunpack.c.h.b16 %v18
  %v70 = vunpack.c.l.b16 %v19
  %v71 = vunpack.c.h.b16 %v19
  %v72 = vunpack.c.l.b16 %v20
  %v73 = vunpack.c.h.b16 %v20
  %v74 = vunpack.c.l.b16 %v21
  %v75 = vunpack.c.h.b16 %v21
  %v76 = vpack.c.b16 %v70, %v68
  %v77 = vpack.c.b16 %v71, %v69
  %v78 = vpack.c.b16 %v74, %v72
  %v79 = vpack.c.b16 %v75, %v73
  %v100 = vunpack.c.l.b16 %v22
  %v101 = vunpack.c.l.b16 %v23
  %v102 = vunpack.c.l.b16 %v24
  %v103 = vunpack.c.l.b16 %v25
  %v104 = vunpack.c.l.b16 %v26
  %v105 = vunpack.c.l.b16 %v27
  %v106 = vunpack.c.l.b16 %v28
  %v107 = vunpack.c.l.b16 %v29
  %v108 = vunpack.c.l.b16 %v30
  %v109 = vunpack.c.l.b16 %v31
  %v110 = vunpack.c.l.b16 %v32
  %v111 = vunpack.c.l.b16 %v33
  %v112 = vunpack.c.l.b16 %v34
  %v113 = vunpack.c.l.b16 %v35
  %v114 = vunpack.c.l.b16 %v36
  %v115 = vunpack.c.l.b16 %v37
  %v116 = vunpack.c.l.b16 %v38
  %v117 = vunpack.c.l.b16 %v39
  %v118 = vpack.c.b16 %v101, %v100
  %v119 = vpack.c.b16 %v103, %v102
  %v120 = vpack.c.b16 %v105, %v104
  %v121 = vpack.c.b16 %v107, %v106
  %v122 = vpack.c.b16 %v109, %v108
  %v123 = vpack.c.b16 %v111, %v110
  %v124 = vpack.c.b16 %v113, %v112
  %v125 = vpack.c.b16 %v115, %v114
  %v126 = vpack.c.b16 %v117, %v116
  %vm136 = vcmask 130048
  %v138 = vsel %vm136, %v77, 0
  %v141 = vsel %vm136, %v79, 0
  %143 = vmatprep.subr.bf16.mxu0 0
  %144 = vmatpush1.bf16.msra.mxu0 %v118
  %145 = vmatprep.subr.bf16.mxu0 0
  %146 = vmatpush1.bf16.msra.mxu0 %v119
  %147 = vmatprep.subr.bf16.mxu0 0
  %148 = vmatpush1.bf16.msra.mxu0 %v120
  %149 = vmatprep.subr.bf16.mxu0 0
  %150 = vmatpush1.bf16.msra.mxu0 %v121
  %151 = vmatprep.subr.bf16.mxu0 0
  %152 = vmatpush1.bf16.msra.mxu0 %v122
  %153 = vmatprep.subr.bf16.mxu0 0
  %154 = vmatpush1.bf16.msra.mxu0 %v123
  %155 = vmatprep.subr.bf16.mxu0 0
  %156 = vmatpush1.bf16.msra.mxu0 %v124
  %157 = vmatprep.subr.bf16.mxu0 0
  %158 = vmatpush1.bf16.msra.mxu0 %v125
  %159 = vmatprep.subr.bf16.mxu0 0
  %160 = vmatpush1.bf16.msra.mxu0 %v126
  %161 = vmatprep.subr.bf16.mxu0 0
  %162 = vmatpush1.bf16.msra.mxu0 0
  %163 = vmatprep.subr.bf16.mxu0 0
  %164 = vmatpush1.bf16.msra.mxu0 0
  %165 = vmatprep.subr.bf16.mxu0 0
  %166 = vmatpush1.bf16.msra.mxu0 0
  %167 = vmatprep.subr.bf16.mxu0 0
  %168 = vmatpush1.bf16.msra.mxu0 0
  %169 = vmatprep.subr.bf16.mxu0 0
  %170 = vmatpush1.bf16.msra.mxu0 0
  %171 = vmatprep.subr.bf16.mxu0 0
  %172 = vmatpush1.bf16.msra.mxu0 0
  %173 = vmatprep.subr.bf16.mxu0 0
  %174 = vmatpush1.bf16.msra.mxu0 0
  %175 = vmatprep.mubr.bf16.mxu0 %v138
  %176 = vmatmul.mubr.bf16.gmra.mrb[0].mxu0 %v76
  %v177 = vpop.f32.mrb[0].mxu0
  %v178 = vadd.f32 %v47, %v177
  %v179 = vpop.f32.mrb[0].mxu0
  %v180 = vpop.f32.mrb[0].mxu0
  %v181 = vadd.f32 %v52, %v180
  %v182 = vpop.f32.mrb[0].mxu0
  %183 = vmatprep.mubr.bf16.mxu0 %v141
  %184 = vmatmul.mubr.bf16.gmra.mrb[0].mxu0 %v78
  %v185 = vpop.f32.mrb[0].mxu0
  %v186 = vadd.f32 %v57, %v185
  %v187 = vpop.f32.mrb[0].mxu0
  %v188 = vpop.f32.mrb[0].mxu0
  %v189 = vadd.f32 %v62, %v188
  %v190 = vpop.f32.mrb[0].mxu0
  %191 = vdwg.mxu0
  %v192 = vmax.f32 %v178, 0.0
  %v193 = vmax.f32 %v181, 0.0
  %v194 = vmax.f32 %v186, 0.0
  %v195 = vmax.f32 %v189, 0.0
  %v196 = vld [vmem:[%s3] sm:$0xff]
  %v197 = vld [vmem:[%s3 + $0x8] sm:$0xff]
  %v198 = vld [vmem:[%s3 + $0x10] sm:$0xff]
  %v199 = vld [vmem:[%s3 + $0x18] sm:$0xff]
  %v200 = vadd.f32 %v192, %v196
  %v201 = vadd.f32 %v193, %v197
  %v202 = vadd.f32 %v194, %v198
  %v203 = vadd.f32 %v195, %v199
  %vm204 = vcmask 261120
  %205 = vst.msk [vmem:[%s4] sm:$0xff] %vm204, %v200
  %206 = vst.msk [vmem:[%s4 + $0x8] sm:$0xff] %vm204, %v201
  %207 = vst.msk [vmem:[%s4 + $0x10] sm:$0xff] %vm204, %v202
  %208 = vst.msk [vmem:[%s4 + $0x18] sm:$0xff] %vm204, %v203
  // Predicated region
  $region18: #{decoder_forward.7} parent=0 // pred_check
    _
  $region19: #{decoder_forward.7} parent=0 // pred_check_branch
    %210 = sbr.rel (0) target = $region21
  $region20: #{decoder_forward.7} parent=0 // pred_region
    _
  $region21: #{decoder_forward.7} parent=0 // pred_fallthru
    _
  // Predicated region
  $region22: #{decoder_forward.7} parent=0 // pred_check
    _
  $region23: #{decoder_forward.7} parent=0 // pred_check_branch
    %212 = sbr.rel (0) target = $region25
  $region24: #{decoder_forward.7} parent=0 // pred_region
    _
  $region25: #{decoder_forward.7} parent=0 // pred_fallthru
    _

// kernel: decoder_forward.8
$region0: #{decoder_forward.8}
  #allocation0 [shape = 'u32[]', space=smem, size = 0x4, offset = 0x4, fixed_abs, tag = 'smem constant byte address 0x4 - core index']
  #allocation1 [shape = 'u32[144,128]{1,0:T(1,128)}', space=vmem, size = 0x12000, scoped, tag = 'internal scratch']
  %s0 = inlined_call_operand.vmem [shape: bf16[8,72], index: 0, kind: input, shape index: {}]
  %s1 = inlined_call_operand.vmem [shape: bf16[72,128], index: 1, kind: input, shape index: {}]
  %s2 = inlined_call_operand.vmem [shape: f32[8,1], index: 2, kind: input, shape index: {}]
  %s3 = inlined_call_operand.vmem [shape: f32[8,128], index: 3, kind: output, shape index: {}]
  %s4 = sld [smem:[#allocation0]]
  $region22: #{decoder_forward.8} parent=0
    _
  %s6 = ssub.s32 1, %s4
  %s7 = scalar_select 0, %s6, %s4
  // Predicated region
  $region2: #{decoder_forward.8} parent=0 // pred_check
    _
  $region3: #{decoder_forward.8} parent=0 // pred_check_branch
    %9 = sbr.rel (0) target = $region5
  $region4: #{decoder_forward.8} parent=0 // pred_region
    _
  $region5: #{decoder_forward.8} parent=0 // pred_fallthru
    _
  // Predicated region
  $region6: #{decoder_forward.8} parent=0 // pred_check
    _
  $region7: #{decoder_forward.8} parent=0 // pred_check_branch
    %11 = sbr.rel (0) target = $region9
  $region8: #{decoder_forward.8} parent=0 // pred_region
    _
  $region9: #{decoder_forward.8} parent=0 // pred_fallthru
    _
  // Predicated region
  $region10: #{decoder_forward.8} parent=0 // pred_check
    _
  $region11: #{decoder_forward.8} parent=0 // pred_check_branch
    %13 = sbr.rel (0) target = $region13
  $region12: #{decoder_forward.8} parent=0 // pred_region
    _
  $region13: #{decoder_forward.8} parent=0 // pred_fallthru
    _
  %v15 = vld [vmem:[%s0] sm:$0xf]
  %v16 = vld [vmem:[%s1] sm:$0xf]
  %v17 = vld [vmem:[%s1 + $0x4] sm:$0xf]
  %v18 = vld [vmem:[%s1 + $0x8] sm:$0xf]
  %v19 = vld [vmem:[%s1 + $0xc] sm:$0xf]
  %v20 = vld [vmem:[%s1 + $0x10] sm:$0xf]
  %v21 = vld [vmem:[%s1 + $0x14] sm:$0xf]
  %v22 = vld [vmem:[%s1 + $0x18] sm:$0xf]
  %v23 = vld [vmem:[%s1 + $0x1c] sm:$0xf]
  %v24 = vld [vmem:[%s1 + $0x20] sm:$0xf]
  %v25 = vld [vmem:[%s2] sm:$0xff]
  %27 = vset.pattern.permute.xlu0 0
  %28 = vperm.xlu0 %27, %v25
  %v29 = vpop.permute.xlu0 %28
  %v40 = vunpack.c.l.b16 %v16
  %v41 = vunpack.c.l.b16 %v17
  %v42 = vunpack.c.l.b16 %v18
  %v43 = vunpack.c.l.b16 %v19
  %v44 = vunpack.c.l.b16 %v20
  %v45 = vunpack.c.l.b16 %v21
  %v46 = vunpack.c.l.b16 %v22
  %v47 = vunpack.c.l.b16 %v23
  %v48 = vunpack.c.l.b16 %v24
  %v49 = vpack.c.b16 %v41, %v40
  %v50 = vpack.c.b16 %v43, %v42
  %v51 = vpack.c.b16 %v45, %v44
  %v52 = vpack.c.b16 %v47, %v46
  %v53 = vpack.c.b16 %v48, %v48
  %vm58 = vcmask 588800
  %v60 = vsel %vm58, %v15, 0
  %vm62 = vcmask 1043456
  %v64 = vsel %vm62, %v53, 0
  %66 = vmatprep.subr.bf16.mxu0 0
  %67 = vmatpush1.bf16.msra.mxu0 %v49
  %68 = vmatprep.subr.bf16.mxu0 0
  %69 = vmatpush1.bf16.msra.mxu0 %v50
  %70 = vmatprep.subr.bf16.mxu0 0
  %71 = vmatpush1.bf16.msra.mxu0 %v51
  %72 = vmatprep.subr.bf16.mxu0 0
  %73 = vmatpush1.bf16.msra.mxu0 %v52
  %74 = vmatprep.subr.bf16.mxu0 0
  %75 = vmatpush1.bf16.msra.mxu0 %v64
  %76 = vmatprep.subr.bf16.mxu0 0
  %77 = vmatpush1.bf16.msra.mxu0 0
  %78 = vmatprep.subr.bf16.mxu0 0
  %79 = vmatpush1.bf16.msra.mxu0 0
  %80 = vmatprep.subr.bf16.mxu0 0
  %81 = vmatpush1.bf16.msra.mxu0 0
  %82 = vmatprep.subr.bf16.mxu0 0
  %83 = vmatpush1.bf16.msra.mxu0 0
  %84 = vmatprep.subr.bf16.mxu0 0
  %85 = vmatpush1.bf16.msra.mxu0 0
  %86 = vmatprep.subr.bf16.mxu0 0
  %87 = vmatpush1.bf16.msra.mxu0 0
  %88 = vmatprep.subr.bf16.mxu0 0
  %89 = vmatpush1.bf16.msra.mxu0 0
  %90 = vmatprep.subr.bf16.mxu0 0
  %91 = vmatpush1.bf16.msra.mxu0 0
  %92 = vmatprep.subr.bf16.mxu0 0
  %93 = vmatpush1.bf16.msra.mxu0 0
  %94 = vmatprep.subr.bf16.mxu0 0
  %95 = vmatpush1.bf16.msra.mxu0 0
  %96 = vmatprep.subr.bf16.mxu0 0
  %97 = vmatpush1.bf16.msra.mxu0 0
  %98 = vmatprep.mubr.bf16.mxu0 0
  %99 = vmatmul.mubr.bf16.gmra.mrb[0].mxu0 %v60
  %v100 = vpop.f32.mrb[0].mxu0
  %v101 = vadd.f32 %v29, %v100
  %v102 = vpop.f32.mrb[0].mxu0
  %v103 = vpop.f32.mrb[0].mxu0
  %v104 = vpop.f32.mrb[0].mxu0
  %105 = vdwg.mxu0
  %v106 = vmax.f32 %v101, 0.0
  %107 = vst [vmem:[%s3] sm:$0xff] %v106
  // Predicated region
  $region14: #{decoder_forward.8} parent=0 // pred_check
    _
  $region15: #{decoder_forward.8} parent=0 // pred_check_branch
    %109 = sbr.rel (0) target = $region17
  $region16: #{decoder_forward.8} parent=0 // pred_region
    _
  $region17: #{decoder_forward.8} parent=0 // pred_fallthru
    _
  // Predicated region
  $region18: #{decoder_forward.8} parent=0 // pred_check
    _
  $region19: #{decoder_forward.8} parent=0 // pred_check_branch
    %111 = sbr.rel (0) target = $region21
  $region20: #{decoder_forward.8} parent=0 // pred_region
    _
  $region21: #{decoder_forward.8} parent=0 // pred_fallthru
    _

// kernel: decoder_forward.9
$region0: #{decoder_forward.9}
  #allocation0 [shape = 'u32[]', space=smem, size = 0x4, offset = 0x4, fixed_abs, tag = 'smem constant byte address 0x4 - core index']
  #allocation1 [shape = 'u32[144,128]{1,0:T(1,128)}', space=vmem, size = 0x12000, scoped, tag = 'internal scratch']
  %s0 = inlined_call_operand.vmem [shape: bf16[8,72], index: 0, kind: input, shape index: {}]
  %s1 = inlined_call_operand.vmem [shape: bf16[72,128], index: 1, kind: input, shape index: {}]
  %s2 = inlined_call_operand.vmem [shape: f32[8,1], index: 2, kind: input, shape index: {}]
  %s3 = inlined_call_operand.vmem [shape: f32[8,128], index: 3, kind: input, shape index: {}]
  %s4 = inlined_call_operand.vmem [shape: f32[8,128], index: 4, kind: input, shape index: {}]
  %s5 = inlined_call_operand.vmem [shape: f32[8,128], index: 5, kind: output, shape index: {}]
  %s6 = sld [smem:[#allocation0]]
  $region30: #{decoder_forward.9} parent=0
    _
  %s8 = ssub.s32 1, %s6
  %s9 = scalar_select 0, %s8, %s6
  // Predicated region
  $region2: #{decoder_forward.9} parent=0 // pred_check
    _
  $region3: #{decoder_forward.9} parent=0 // pred_check_branch
    %11 = sbr.rel (0) target = $region5
  $region4: #{decoder_forward.9} parent=0 // pred_region
    _
  $region5: #{decoder_forward.9} parent=0 // pred_fallthru
    _
  // Predicated region
  $region6: #{decoder_forward.9} parent=0 // pred_check
    _
  $region7: #{decoder_forward.9} parent=0 // pred_check_branch
    %13 = sbr.rel (0) target = $region9
  $region8: #{decoder_forward.9} parent=0 // pred_region
    _
  $region9: #{decoder_forward.9} parent=0 // pred_fallthru
    _
  // Predicated region
  $region10: #{decoder_forward.9} parent=0 // pred_check
    _
  $region11: #{decoder_forward.9} parent=0 // pred_check_branch
    %15 = sbr.rel (0) target = $region13
  $region12: #{decoder_forward.9} parent=0 // pred_region
    _
  $region13: #{decoder_forward.9} parent=0 // pred_fallthru
    _
  // Predicated region
  $region14: #{decoder_forward.9} parent=0 // pred_check
    _
  $region15: #{decoder_forward.9} parent=0 // pred_check_branch
    %17 = sbr.rel (0) target = $region17
  $region16: #{decoder_forward.9} parent=0 // pred_region
    _
  $region17: #{decoder_forward.9} parent=0 // pred_fallthru
    _
  // Predicated region
  $region18: #{decoder_forward.9} parent=0 // pred_check
    _
  $region19: #{decoder_forward.9} parent=0 // pred_check_branch
    %19 = sbr.rel (0) target = $region21
  $region20: #{decoder_forward.9} parent=0 // pred_region
    _
  $region21: #{decoder_forward.9} parent=0 // pred_fallthru
    _
  %v21 = vld [vmem:[%s0] sm:$0xf]
  %v22 = vld [vmem:[%s1] sm:$0xf]
  %v23 = vld [vmem:[%s1 + $0x4] sm:$0xf]
  %v24 = vld [vmem:[%s1 + $0x8] sm:$0xf]
  %v25 = vld [vmem:[%s1 + $0xc] sm:$0xf]
  %v26 = vld [vmem:[%s1 + $0x10] sm:$0xf]
  %v27 = vld [vmem:[%s1 + $0x14] sm:$0xf]
  %v28 = vld [vmem:[%s1 + $0x18] sm:$0xf]
  %v29 = vld [vmem:[%s1 + $0x1c] sm:$0xf]
  %v30 = vld [vmem:[%s1 + $0x20] sm:$0xf]
  %v31 = vld [vmem:[%s2] sm:$0xff]
  %33 = vset.pattern.permute.xlu0 0
  %34 = vperm.xlu0 %33, %v31
  %v35 = vpop.permute.xlu0 %34
  %v46 = vunpack.c.l.b16 %v22
  %v47 = vunpack.c.l.b16 %v23
  %v48 = vunpack.c.l.b16 %v24
  %v49 = vunpack.c.l.b16 %v25
  %v50 = vunpack.c.l.b16 %v26
  %v51 = vunpack.c.l.b16 %v27
  %v52 = vunpack.c.l.b16 %v28
  %v53 = vunpack.c.l.b16 %v29
  %v54 = vunpack.c.l.b16 %v30
  %v55 = vpack.c.b16 %v47, %v46
  %v56 = vpack.c.b16 %v49, %v48
  %v57 = vpack.c.b16 %v51, %v50
  %v58 = vpack.c.b16 %v53, %v52
  %v59 = vpack.c.b16 %v54, %v54
  %vm64 = vcmask 588800
  %v66 = vsel %vm64, %v21, 0
  %vm68 = vcmask 1043456
  %v70 = vsel %vm68, %v59, 0
  %72 = vmatprep.subr.bf16.mxu0 0
  %73 = vmatpush1.bf16.msra.mxu0 %v55
  %74 = vmatprep.subr.bf16.mxu0 0
  %75 = vmatpush1.bf16.msra.mxu0 %v56
  %76 = vmatprep.subr.bf16.mxu0 0
  %77 = vmatpush1.bf16.msra.mxu0 %v57
  %78 = vmatprep.subr.bf16.mxu0 0
  %79 = vmatpush1.bf16.msra.mxu0 %v58
  %80 = vmatprep.subr.bf16.mxu0 0
  %81 = vmatpush1.bf16.msra.mxu0 %v70
  %82 = vmatprep.subr.bf16.mxu0 0
  %83 = vmatpush1.bf16.msra.mxu0 0
  %84 = vmatprep.subr.bf16.mxu0 0
  %85 = vmatpush1.bf16.msra.mxu0 0
  %86 = vmatprep.subr.bf16.mxu0 0
  %87 = vmatpush1.bf16.msra.mxu0 0
  %88 = vmatprep.subr.bf16.mxu0 0
  %89 = vmatpush1.bf16.msra.mxu0 0
  %90 = vmatprep.subr.bf16.mxu0 0
  %91 = vmatpush1.bf16.msra.mxu0 0
  %92 = vmatprep.subr.bf16.mxu0 0
  %93 = vmatpush1.bf16.msra.mxu0 0
  %94 = vmatprep.subr.bf16.mxu0 0
  %95 = vmatpush1.bf16.msra.mxu0 0
  %96 = vmatprep.subr.bf16.mxu0 0
  %97 = vmatpush1.bf16.msra.mxu0 0
  %98 = vmatprep.subr.bf16.mxu0 0
  %99 = vmatpush1.bf16.msra.mxu0 0
  %100 = vmatprep.subr.bf16.mxu0 0
  %101 = vmatpush1.bf16.msra.mxu0 0
  %102 = vmatprep.subr.bf16.mxu0 0
  %103 = vmatpush1.bf16.msra.mxu0 0
  %104 = vmatprep.mubr.bf16.mxu0 0
  %105 = vmatmul.mubr.bf16.gmra.mrb[0].mxu0 %v66
  %v106 = vpop.f32.mrb[0].mxu0
  %v107 = vadd.f32 %v35, %v106
  %v108 = vpop.f32.mrb[0].mxu0
  %v109 = vpop.f32.mrb[0].mxu0
  %v110 = vpop.f32.mrb[0].mxu0
  %111 = vdwg.mxu0
  %v112 = vld [vmem:[%s3] sm:$0xff]
  %v113 = vadd.f32 %v107, %v112
  %v114 = vmax.f32 %v113, 0.0
  %v115 = vld [vmem:[%s4] sm:$0xff]
  %v116 = vadd.f32 %v114, %v115
  %117 = vst [vmem:[%s5] sm:$0xff] %v116
  // Predicated region
  $region22: #{decoder_forward.9} parent=0 // pred_check
    _
  $region23: #{decoder_forward.9} parent=0 // pred_check_branch
    %119 = sbr.rel (0) target = $region25
  $region24: #{decoder_forward.9} parent=0 // pred_region
    _
  $region25: #{decoder_forward.9} parent=0 // pred_fallthru
    _
  // Predicated region
  $region26: #{decoder_forward.9} parent=0 // pred_check
    _
  $region27: #{decoder_forward.9} parent=0 // pred_check_branch
    %121 = sbr.rel (0) target = $region29
  $region28: #{decoder_forward.9} parent=0 // pred_region
    _
  $region29: #{decoder_forward.9} parent=0 // pred_fallthru
    _

// kernel: decoder_forward.10
$region0: #{decoder_forward.10}
  #allocation0 [shape = 'u32[]', space=smem, size = 0x4, offset = 0x4, fixed_abs, tag = 'smem constant byte address 0x4 - core index']
  #allocation1 [shape = 'u32[144,128]{1,0:T(1,128)}', space=vmem, size = 0x12000, scoped, tag = 'internal scratch']
  %s0 = inlined_call_operand.vmem [shape: bf16[16,72], index: 0, kind: input, shape index: {}]
  %s1 = inlined_call_operand.vmem [shape: bf16[72,128], index: 1, kind: input, shape index: {}]
  %s2 = inlined_call_operand.vmem [shape: f32[16,1], index: 2, kind: input, shape index: {}]
  %s3 = inlined_call_operand.vmem [shape: f32[16,128], index: 3, kind: input, shape index: {}]
  %s4 = inlined_call_operand.vmem [shape: f32[16,128], index: 4, kind: output, shape index: {}]
  %s5 = sld [smem:[#allocation0]]
  $region26: #{decoder_forward.10} parent=0
    _
  %s7 = ssub.s32 1, %s5
  %s8 = scalar_select 0, %s7, %s5
  // Predicated region
  $region2: #{decoder_forward.10} parent=0 // pred_check
    _
  $region3: #{decoder_forward.10} parent=0 // pred_check_branch
    %10 = sbr.rel (0) target = $region5
  $region4: #{decoder_forward.10} parent=0 // pred_region
    _
  $region5: #{decoder_forward.10} parent=0 // pred_fallthru
    _
  // Predicated region
  $region6: #{decoder_forward.10} parent=0 // pred_check
    _
  $region7: #{decoder_forward.10} parent=0 // pred_check_branch
    %12 = sbr.rel (0) target = $region9
  $region8: #{decoder_forward.10} parent=0 // pred_region
    _
  $region9: #{decoder_forward.10} parent=0 // pred_fallthru
    _
  // Predicated region
  $region10: #{decoder_forward.10} parent=0 // pred_check
    _
  $region11: #{decoder_forward.10} parent=0 // pred_check_branch
    %14 = sbr.rel (0) target = $region13
  $region12: #{decoder_forward.10} parent=0 // pred_region
    _
  $region13: #{decoder_forward.10} parent=0 // pred_fallthru
    _
  // Predicated region
  $region14: #{decoder_forward.10} parent=0 // pred_check
    _
  $region15: #{decoder_forward.10} parent=0 // pred_check_branch
    %16 = sbr.rel (0) target = $region17
  $region16: #{decoder_forward.10} parent=0 // pred_region
    _
  $region17: #{decoder_forward.10} parent=0 // pred_fallthru
    _
  %v18 = vld [vmem:[%s0] sm:$0xf]
  %v19 = vld [vmem:[%s0 + $0x4] sm:$0xf]
  %v20 = vld [vmem:[%s1] sm:$0xf]
  %v21 = vld [vmem:[%s1 + $0x4] sm:$0xf]
  %v22 = vld [vmem:[%s1 + $0x8] sm:$0xf]
  %v23 = vld [vmem:[%s1 + $0xc] sm:$0xf]
  %v24 = vld [vmem:[%s1 + $0x10] sm:$0xf]
  %v25 = vld [vmem:[%s1 + $0x14] sm:$0xf]
  %v26 = vld [vmem:[%s1 + $0x18] sm:$0xf]
  %v27 = vld [vmem:[%s1 + $0x1c] sm:$0xf]
  %v28 = vld [vmem:[%s1 + $0x20] sm:$0xf]
  %v29 = vld [vmem:[%s2] sm:$0xff]
  %v30 = vld [vmem:[%s2 + $0x8] sm:$0xff]
  %32 = vset.pattern.permute.xlu0 0
  %33 = vperm.xlu0 %32, %v29
  %v34 = vpop.permute.xlu0 %33
  %37 = vset.pattern.permute.xlu0 0
  %38 = vperm.xlu0 %37, %v30
  %v39 = vpop.permute.xlu0 %38
  %v43 = vunpack.c.l.b16 %v18
  %v44 = vunpack.c.l.b16 %v19
  %v45 = vpack.c.b16 %v44, %v43
  %v55 = vunpack.c.l.b16 %v20
  %v56 = vunpack.c.l.b16 %v21
  %v57 = vunpack.c.l.b16 %v22
  %v58 = vunpack.c.l.b16 %v23
  %v59 = vunpack.c.l.b16 %v24
  %v60 = vunpack.c.l.b16 %v25
  %v61 = vunpack.c.l.b16 %v26
  %v62 = vunpack.c.l.b16 %v27
  %v63 = vunpack.c.l.b16 %v28
  %v64 = vpack.c.b16 %v56, %v55
  %v65 = vpack.c.b16 %v58, %v57
  %v66 = vpack.c.b16 %v60, %v59
  %v67 = vpack.c.b16 %v62, %v61
  %v68 = vpack.c.b16 %v63, %v63
  %vm73 = vcmask 588800
  %v75 = vsel %vm73, %v45, 0
  %vm77 = vcmask 1043456
  %v79 = vsel %vm77, %v68, 0
  %81 = vmatprep.subr.bf16.mxu0 0
  %82 = vmatpush1.bf16.msra.mxu0 %v64
  %83 = vmatprep.subr.bf16.mxu0 0
  %84 = vmatpush1.bf16.msra.mxu0 %v65
  %85 = vmatprep.subr.bf16.mxu0 0
  %86 = vmatpush1.bf16.msra.mxu0 %v66
  %87 = vmatprep.subr.bf16.mxu0 0
  %88 = vmatpush1.bf16.msra.mxu0 %v67
  %89 = vmatprep.subr.bf16.mxu0 0
  %90 = vmatpush1.bf16.msra.mxu0 %v79
  %91 = vmatprep.subr.bf16.mxu0 0
  %92 = vmatpush1.bf16.msra.mxu0 0
  %93 = vmatprep.subr.bf16.mxu0 0
  %94 = vmatpush1.bf16.msra.mxu0 0
  %95 = vmatprep.subr.bf16.mxu0 0
  %96 = vmatpush1.bf16.msra.mxu0 0
  %97 = vmatprep.subr.bf16.mxu0 0
  %98 = vmatpush1.bf16.msra.mxu0 0
  %99 = vmatprep.subr.bf16.mxu0 0
  %100 = vmatpush1.bf16.msra.mxu0 0
  %101 = vmatprep.subr.bf16.mxu0 0
  %102 = vmatpush1.bf16.msra.mxu0 0
  %103 = vmatprep.subr.bf16.mxu0 0
  %104 = vmatpush1.bf16.msra.mxu0 0
  %105 = vmatprep.subr.bf16.mxu0 0
  %106 = vmatpush1.bf16.msra.mxu0 0
  %107 = vmatprep.subr.bf16.mxu0 0
  %108 = vmatpush1.bf16.msra.mxu0 0
  %109 = vmatprep.subr.bf16.mxu0 0
  %110 = vmatpush1.bf16.msra.mxu0 0
  %111 = vmatprep.subr.bf16.mxu0 0
  %112 = vmatpush1.bf16.msra.mxu0 0
  %113 = vmatprep.mubr.bf16.mxu0 0
  %114 = vmatmul.mubr.bf16.gmra.mrb[0].mxu0 %v75
  %v115 = vpop.f32.mrb[0].mxu0
  %v116 = vadd.f32 %v34, %v115
  %v117 = vpop.f32.mrb[0].mxu0
  %v118 = vpop.f32.mrb[0].mxu0
  %v119 = vadd.f32 %v39, %v118
  %v120 = vpop.f32.mrb[0].mxu0
  %121 = vdwg.mxu0
  %v122 = vmax.f32 %v116, 0.0
  %v123 = vmax.f32 %v119, 0.0
  %v124 = vld [vmem:[%s3] sm:$0xff]
  %v125 = vld [vmem:[%s3 + $0x8] sm:$0xff]
  %v126 = vadd.f32 %v122, %v124
  %v127 = vadd.f32 %v123, %v125
  %128 = vst [vmem:[%s4] sm:$0xff] %v126
  %129 = vst [vmem:[%s4 + $0x8] sm:$0xff] %v127
  // Predicated region
  $region18: #{decoder_forward.10} parent=0 // pred_check
    _
  $region19: #{decoder_forward.10} parent=0 // pred_check_branch
    %131 = sbr.rel (0) target = $region21
  $region20: #{decoder_forward.10} parent=0 // pred_region
    _
  $region21: #{decoder_forward.10} parent=0 // pred_fallthru
    _
  // Predicated region
  $region22: #{decoder_forward.10} parent=0 // pred_check
    _
  $region23: #{decoder_forward.10} parent=0 // pred_check_branch
    %133 = sbr.rel (0) target = $region25
  $region24: #{decoder_forward.10} parent=0 // pred_region
    _
  $region25: #{decoder_forward.10} parent=0 // pred_fallthru
    _

// kernel: decoder_forward.11
$region0: #{decoder_forward.11}
  #allocation0 [shape = 'u32[]', space=smem, size = 0x4, offset = 0x4, fixed_abs, tag = 'smem constant byte address 0x4 - core index']
  #allocation1 [shape = 'u32[144,128]{1,0:T(1,128)}', space=vmem, size = 0x12000, scoped, tag = 'internal scratch']
  %s0 = inlined_call_operand.vmem [shape: bf16[4,36], index: 0, kind: input, shape index: {}]
  %s1 = inlined_call_operand.vmem [shape: bf16[36,512], index: 1, kind: input, shape index: {}]
  %s2 = inlined_call_operand.vmem [shape: f32[4,1], index: 2, kind: input, shape index: {}]
  %s3 = inlined_call_operand.vmem [shape: f32[4,512], index: 3, kind: output, shape index: {}]
  %s4 = sld [smem:[#allocation0]]
  $region83: #{decoder_forward.11} parent=0
    _
  %s6 = ssub.s32 1, %s4
  %s7 = scalar_select 0, %s6, %s4
  $region1: #{decoder_forward.11} parent=0
    #allocation2 [shape = 'u8[40960]{0}', space=vmem, size = 0xa000, scoped, tag = 'input window, operand 1']
    loop: start=0, step=1, limit=4
    $region2: #{decoder_forward.11} parent=1 // loop_pre_header
      _
    $region3: #{decoder_forward.11} parent=1 // loop_header
      %s9 = sphi 0, %s13
      %p10 = scmp.ge.s32.totalorder %s9, 4
      %s17 = sphi 0, %s17
      %s19 = sphi 0, %s17
      %s20 = sphi 0, %s19
      %s34 = sphi 0, %s20
      %s40 = sphi 0, %s42
      %s43 = sphi 0, %s40
      %s44 = sphi 0, %s43
      %s60 = sphi 0, %s44
      %s64 = sphi 0, %s64
      %s66 = sphi 0, %s64
      %s67 = sphi 0, %s66
      %s81 = sphi 0, %s67
      %s87 = sphi 0, %s89
      %s90 = sphi 0, %s87
      %s91 = sphi 0, %s90
      %s107 = sphi 0, %s91
    $region4: #{decoder_forward.11} parent=1 // loop_header_branch
      %12 = sbr.rel (%p10) target = $region8
    $region5: #{decoder_forward.11} parent=1 // loop_body
      %s14 = ssub.s32 %s9, 1
      %s15 = ssub.s32 %s9, 2
      %s16 = sadd.s32 %s9, 1
      %s18 = sadd.s32 %s17, 1
      %p21 = scmp.eq.s32.totalorder %s9, 1
      %p22 = scmp.ne.s32.totalorder %s17, %s19
      %p23 = scmp.eq.s32.totalorder %s9, 0
      %p24 = por %p22, %p23
      %p25 = scmp.ne.s32.totalorder %s17, %s19
      %p26 = scmp.eq.s32.totalorder %s14, 1
      %p27 = por %p25, %p26
      %p28 = scmp.ne.s32.totalorder %s19, %s20
      %p29 = scmp.eq.s32.totalorder %s14, 0
      %p30 = por %p28, %p29
      %p31 = scmp.ne.s32.totalorder %s19, %s20
      %p32 = scmp.eq.s32.totalorder %s15, 1
      %p33 = por %p31, %p32
      %p35 = scmp.ne.s32.totalorder %s20, %s34
      %p36 = scmp.eq.s32.totalorder %s15, 0
      %p37 = por %p35, %p36
      %s38 = ssub.s32 %s9, %s16
      %p39 = scmp.eq.s32.totalorder %s38, 0
      %s41 = sadd.s32 %s40, 1
      %s42 = scalar_select %p39, %s40, %s41
      %p45 = pneg %p39
      %p46 = scmp.eq.s32.totalorder %s9, 1
      %p47 = por %p45, %p46
      %p48 = scmp.ne.s32.totalorder %s40, %s43
      %p49 = scmp.eq.s32.totalorder %s9, 0
      %p50 = por %p48, %p49
      %p51 = scmp.ne.s32.totalorder %s40, %s43
      %p52 = scmp.eq.s32.totalorder %s14, 1
      %p53 = por %p51, %p52
      %p54 = scmp.ne.s32.totalorder %s43, %s44
      %p55 = scmp.eq.s32.totalorder %s14, 0
      %p56 = por %p54, %p55
      %p57 = scmp.ne.s32.totalorder %s43, %s44
      %p58 = scmp.eq.s32.totalorder %s15, 1
      %p59 = por %p57, %p58
      %p61 = scmp.ne.s32.totalorder %s44, %s60
      %p62 = scmp.eq.s32.totalorder %s15, 0
      %p63 = por %p61, %p62
      %s65 = sadd.s32 %s64, 1
      %p68 = scmp.eq.s32.totalorder %s9, 1
      %p69 = scmp.ne.s32.totalorder %s64, %s66
      %p70 = scmp.eq.s32.totalorder %s9, 0
      %p71 = por %p69, %p70
      %p72 = scmp.ne.s32.totalorder %s64, %s66
      %p73 = scmp.eq.s32.totalorder %s14, 1
      %p74 = por %p72, %p73
      %p75 = scmp.ne.s32.totalorder %s66, %s67
      %p76 = scmp.eq.s32.totalorder %s14, 0
      %p77 = por %p75, %p76
      %p78 = scmp.ne.s32.totalorder %s66, %s67
      %p79 = scmp.eq.s32.totalorder %s15, 1
      %p80 = por %p78, %p79
      %p82 = scmp.ne.s32.totalorder %s67, %s81
      %p83 = scmp.eq.s32.totalorder %s15, 0
      %p84 = por %p82, %p83
      %s85 = ssub.s32 %s9, %s16
      %p86 = scmp.eq.s32.totalorder %s85, 0
      %s88 = sadd.s32 %s87, 1
      %s89 = scalar_select %p86, %s87, %s88
      %p92 = pneg %p86
      %p93 = scmp.eq.s32.totalorder %s9, 1
      %p94 = por %p92, %p93
      %p95 = scmp.ne.s32.totalorder %s87, %s90
      %p96 = scmp.eq.s32.totalorder %s9, 0
      %p97 = por %p95, %p96
      %p98 = scmp.ne.s32.totalorder %s87, %s90
      %p99 = scmp.eq.s32.totalorder %s14, 1
      %p100 = por %p98, %p99
      %p101 = scmp.ne.s32.totalorder %s90, %s91
      %p102 = scmp.eq.s32.totalorder %s14, 0
      %p103 = por %p101, %p102
      %p104 = scmp.ne.s32.totalorder %s90, %s91
      %p105 = scmp.eq.s32.totalorder %s15, 1
      %p106 = por %p104, %p105
      %p108 = scmp.ne.s32.totalorder %s91, %s107
      %p109 = scmp.eq.s32.totalorder %s15, 0
      %p110 = por %p108, %p109
      %p111 = scmp.le.s32.totalorder 1, %s9
      %p112 = scmp.lt.s32.totalorder %s9, 3
      %p113 = pnand %p111, %p112
      %p114 = pneg %p113
      // Predicated region
      $region9: #{decoder_forward.11} parent=5 // pred_check
        _
      $region10: #{decoder_forward.11} parent=5 // pred_check_branch
        %116 = sbr.rel (%p113) target = $region12
      $region11: #{decoder_forward.11} parent=5 // pred_region
        %s117 = ssub.s32 %s9, 1
        // Predicated region
        $region13: #{decoder_forward.11} parent=11 // pred_check
          %p118 = pneg %p30
        $region14: #{decoder_forward.11} parent=11 // pred_check_branch
          %120 = sbr.rel (%p118) target = $region16
        $region15: #{decoder_forward.11} parent=11 // pred_region
          _
        $region16: #{decoder_forward.11} parent=11 // pred_fallthru
          _
        // Predicated region
        $region17: #{decoder_forward.11} parent=11 // pred_check
          %p121 = pneg %p77
        $region18: #{decoder_forward.11} parent=11 // pred_check_branch
          %123 = sbr.rel (%p121) target = $region20
        $region19: #{decoder_forward.11} parent=11 // pred_region
          _
        $region20: #{decoder_forward.11} parent=11 // pred_fallthru
          _
      $region12: #{decoder_forward.11} parent=5 // pred_fallthru
        _
      %p124 = scmp.lt.s32.totalorder %s9, 2
      // Predicated region
      $region21: #{decoder_forward.11} parent=5 // pred_check
        %p125 = pneg %p124
      $region22: #{decoder_forward.11} parent=5 // pred_check_branch
        %127 = sbr.rel (%p125) target = $region24
      $region23: #{decoder_forward.11} parent=5 // pred_region
        // Predicated region
        $region25: #{decoder_forward.11} parent=23 // pred_check
          %p128 = pneg %p50
        $region26: #{decoder_forward.11} parent=23 // pred_check_branch
          %130 = sbr.rel (%p128) target = $region28
        $region27: #{decoder_forward.11} parent=23 // pred_region
          %s131 = sand.u32 %s40, 1
          %s132 = sand.u32 %s40, 1
          %s133 = smul.addr %s132, 40
          %s134 = scalar_lea.vmem [#allocation2], %s133
          %s135 = smul.u32 2, %s9
          %s136 = smul.addr %s135, 4
          %s137 = scalar_lea.vmem %s1, %s136
          // Predicated region
          $region29: #{decoder_forward.11} parent=27 // pred_check
            _
          $region30: #{decoder_forward.11} parent=27 // pred_check_branch
            %139 = sbr.rel (0) target = $region32
          $region31: #{decoder_forward.11} parent=27 // pred_region
            // Predicated region
            $region33: #{decoder_forward.11} parent=31 // pred_check
              _
            $region34: #{decoder_forward.11} parent=31 // pred_check_branch
              %141 = sbr.rel (0) target = $region36
            $region35: #{decoder_forward.11} parent=31 // pred_region
              // Predicated region
              $region48: #{decoder_forward.11} parent=35 // pred_check
                _
              $region49: #{decoder_forward.11} parent=35 // pred_check_branch
                %164 = sbr.rel (0) target = $region51
              $region50: #{decoder_forward.11} parent=35 // pred_region
                loop: start=0, step=1, limit=1
                $region52: #{decoder_forward.11} parent=50 // loop_pre_header
                  _
                $region53: #{decoder_forward.11} parent=50 // loop_header
                  %s166 = sphi 0, %s170
                  %p167 = scmp.ge.s32.totalorder %s166, 1
                  %s171 = sphi %s137, %s137
                  %s172 = sphi %s134, %s134
                $region54: #{decoder_forward.11} parent=50 // loop_header_branch
                  %169 = sbr.rel (%p167) target = $region58
                $region55: #{decoder_forward.11} parent=50 // loop_body
                  %v173 = vld [vmem:[%s171] sm:$0xff]
                  %174 = vst [vmem:[%s172] sm:$0xff] %v173
                  %v175 = vld [vmem:[%s171 + $0x10] sm:$0xff]
                  %176 = vst [vmem:[%s172 + $0x8] sm:$0xff] %v175
                  %v177 = vld [vmem:[%s171 + $0x20] sm:$0xff]
                  %178 = vst [vmem:[%s172 + $0x10] sm:$0xff] %v177
                  %v179 = vld [vmem:[%s171 + $0x30] sm:$0xff]
                  %180 = vst [vmem:[%s172 + $0x18] sm:$0xff] %v179
                  %v181 = vld [vmem:[%s171 + $0x40] sm:$0xff]
                  %182 = vst [vmem:[%s172 + $0x20] sm:$0xff] %v181
                $region56: #{decoder_forward.11} parent=50 // loop_footer
                  %s170 = sadd.s32 1, %s166
                $region57: #{decoder_forward.11} parent=50 // loop_footer_branch
                  %165 = sbr.rel target = $region53
                $region58: #{decoder_forward.11} parent=50 // loop_exit
                  _
              $region51: #{decoder_forward.11} parent=35 // pred_fallthru
                _
              // Predicated region
              $region59: #{decoder_forward.11} parent=35 // pred_check
                _
              $region60: #{decoder_forward.11} parent=35 // pred_check_branch
                %184 = sbr.rel target = $region62
              $region61: #{decoder_forward.11} parent=35 // pred_region
                _
              $region62: #{decoder_forward.11} parent=35 // pred_fallthru
                _
            $region36: #{decoder_forward.11} parent=31 // pred_fallthru
              _
            // Predicated region
            $region37: #{decoder_forward.11} parent=31 // pred_check
              _
            $region38: #{decoder_forward.11} parent=31 // pred_check_branch
              %143 = sbr.rel target = $region40
            $region39: #{decoder_forward.11} parent=31 // pred_region
              loop: start=0, step=1, limit=1
              $region41: #{decoder_forward.11} parent=39 // loop_pre_header
                _
              $region42: #{decoder_forward.11} parent=39 // loop_header
                %s146 = sphi 0, %s150
                %p147 = scmp.ge.s32.totalorder %s146, 1
                %s151 = sphi %s137, %s137
                %s152 = sphi %s134, %s134
              $region43: #{decoder_forward.11} parent=39 // loop_header_branch
                %149 = sbr.rel (%p147) target = $region47
              $region44: #{decoder_forward.11} parent=39 // loop_body
                %v153 = vld [vmem:[%s151] sm:$0xff]
                %154 = vst [vmem:[%s152] sm:$0xff] %v153
                %v155 = vld [vmem:[%s151 + $0x10] sm:$0xff]
                %156 = vst [vmem:[%s152 + $0x8] sm:$0xff] %v155
                %v157 = vld [vmem:[%s151 + $0x20] sm:$0xff]
                %158 = vst [vmem:[%s152 + $0x10] sm:$0xff] %v157
                %v159 = vld [vmem:[%s151 + $0x30] sm:$0xff]
                %160 = vst [vmem:[%s152 + $0x18] sm:$0xff] %v159
                %v161 = vld [vmem:[%s151 + $0x40] sm:$0xff]
                %162 = vst [vmem:[%s152 + $0x20] sm:$0xff] %v161
              $region45: #{decoder_forward.11} parent=39 // loop_footer
                %s150 = sadd.s32 1, %s146
              $region46: #{decoder_forward.11} parent=39 // loop_footer_branch
                %145 = sbr.rel target = $region42
              $region47: #{decoder_forward.11} parent=39 // loop_exit
                _
            $region40: #{decoder_forward.11} parent=31 // pred_fallthru
              _
          $region32: #{decoder_forward.11} parent=27 // pred_fallthru
            _
          %185 = vnop
        $region28: #{decoder_forward.11} parent=23 // pred_fallthru
          _
      $region24: #{decoder_forward.11} parent=5 // pred_fallthru
        _
      %p186 = scmp.le.s32.totalorder 1, %s9
      %p187 = scmp.lt.s32.totalorder %s9, 3
      %p188 = pnand %p186, %p187
      %p189 = pneg %p188
      // Predicated region
      $region63: #{decoder_forward.11} parent=5 // pred_check
        _
      $region64: #{decoder_forward.11} parent=5 // pred_check_branch
        %191 = sbr.rel (%p188) target = $region66
      $region65: #{decoder_forward.11} parent=5 // pred_region
        %s192 = ssub.s32 %s9, 1
        %s193 = sand.u32 %s43, 1
        %s194 = sand.u32 %s43, 1
        %s195 = smul.addr %s194, 40
        %s196 = scalar_lea.vmem [#allocation2], %s195
        // Predicated region
        $region67: #{decoder_forward.11} parent=65 // pred_check
          %p197 = pneg %p56
        $region68: #{decoder_forward.11} parent=65 // pred_check_branch
          %199 = sbr.rel (%p197) target = $region70
        $region69: #{decoder_forward.11} parent=65 // pred_region
          _
        $region70: #{decoder_forward.11} parent=65 // pred_fallthru
          _
        %p200 = pneg %p30
        %p201 = pneg %p27
        %s202 = sand.u32 %s43, 1
        %s203 = sand.u32 %s43, 1
        %s204 = smul.addr %s203, 40
        %s205 = scalar_lea.vmem [#allocation2], %s204
        %p206 = pneg %p56
        %p207 = pneg %p53
        %p208 = pneg %p77
        %p209 = pneg %p74
        %p210 = pneg %p103
        %p211 = pneg %p100
        %s212 = smul.u32 2, %s14
        %p213 = scmp.lt.s32.totalorder %s212, 3
        %s214 = scalar_select %p213, %s212, 3
        %s215 = smul.addr %s214, 4
        %s216 = scalar_lea.vmem %s3, %s215
        %s217 = smul.u32 2, %s14
        %s218 = smul.u32 2, %s14
        %p219 = scmp.lt.s32.totalorder %s218, 3
        %s220 = scalar_select %p219, %s218, 3
        %s221 = smul.addr %s220, 4
        %s222 = scalar_lea.vmem %s3, %s221
        %s223 = smul.u32 2, %s14
        %v225 = vld [vmem:[%s0] sm:$0x3]
        %v226 = vld [vmem:[%s196] sm:$0xff]
        %v227 = vld [vmem:[%s196 + $0x8] sm:$0xff]
        %v228 = vld [vmem:[%s196 + $0x10] sm:$0xff]
        %v229 = vld [vmem:[%s196 + $0x18] sm:$0xff]
        %v230 = vld [vmem:[%s196 + $0x20] sm:$0x33]
        %v231 = vld [vmem:[%s2] sm:$0xf]
        %233 = vset.pattern.permute.xlu0 0
        %234 = vperm.xlu0 %233, %v231
        %v235 = vpop.permute.xlu0 %234
        %v242 = vunpack.c.l.b16 %v226
        %v243 = vunpack.c.h.b16 %v226
        %v244 = vunpack.c.l.b16 %v227
        %v245 = vunpack.c.h.b16 %v227
        %v246 = vunpack.c.l.b16 %v228
        %v247 = vunpack.c.h.b16 %v228
        %v248 = vunpack.c.l.b16 %v229
        %v249 = vunpack.c.h.b16 %v229
        %v250 = vunpack.c.l.b16 %v230
        %v251 = vunpack.c.h.b16 %v230
        %v252 = vpack.c.b16 %v244, %v242
        %v253 = vpack.c.b16 %v245, %v243
        %v254 = vpack.c.b16 %v248, %v246
        %v255 = vpack.c.b16 %v249, %v247
        %v256 = vpack.c.b16 %v250, %v250
        %v257 = vpack.c.b16 %v251, %v251
        %vm262 = vcmask 293888
        %v264 = vsel %vm262, %v225, 0
        %vm266 = vcmask 1041408
        %v268 = vsel %vm266, %v256, 0
        %v271 = vsel %vm266, %v257, 0
        %273 = vmatprep.subr.bf16.mxu0 %v253
        %274 = vmatpush1.bf16.msra.mxu0 %v252
        %275 = vmatprep.subr.bf16.mxu0 %v255
        %276 = vmatpush1.bf16.msra.mxu0 %v254
        %277 = vmatprep.subr.bf16.mxu0 %v271
        %278 = vmatpush1.bf16.msra.mxu0 %v268
        %279 = vmatprep.subr.bf16.mxu0 0
        %280 = vmatpush1.bf16.msra.mxu0 0
        %281 = vmatprep.subr.bf16.mxu0 0
        %282 = vmatpush1.bf16.msra.mxu0 0
        %283 = vmatprep.subr.bf16.mxu0 0
        %284 = vmatpush1.bf16.msra.mxu0 0
        %285 = vmatprep.subr.bf16.mxu0 0
        %286 = vmatpush1.bf16.msra.mxu0 0
        %287 = vmatprep.subr.bf16.mxu0 0
        %288 = vmatpush1.bf16.msra.mxu0 0
        %289 = vmatprep.subr.bf16.mxu0 0
        %290 = vmatpush1.bf16.msra.mxu0 0
        %291 = vmatprep.subr.bf16.mxu0 0
        %292 = vmatpush1.bf16.msra.mxu0 0
        %293 = vmatprep.subr.bf16.mxu0 0
        %294 = vmatpush1.bf16.msra.mxu0 0
        %295 = vmatprep.subr.bf16.mxu0 0
        %296 = vmatpush1.bf16.msra.mxu0 0
        %297 = vmatprep.subr.bf16.mxu0 0
        %298 = vmatpush1.bf16.msra.mxu0 0
        %299 = vmatprep.subr.bf16.mxu0 0
        %300 = vmatpush1.bf16.msra.mxu0 0
        %301 = vmatprep.subr.bf16.mxu0 0
        %302 = vmatpush1.bf16.msra.mxu0 0
        %303 = vmatprep.subr.bf16.mxu0 0
        %304 = vmatpush1.bf16.msra.mxu0 0
        %305 = vmatprep.mubr.bf16.mxu0 0
        %306 = vmatmul.mubr.bf16.gmra.mrb[0].mxu0 %v264
        %v307 = vpop.f32.mrb[0].mxu0
        %v308 = vadd.f32 %v235, %v307
        %v309 = vpop.f32.mrb[0].mxu0
        %v310 = vadd.f32 %v235, %v309
        %v311 = vpop.f32.mrb[0].mxu0
        %v312 = vpop.f32.mrb[0].mxu0
        %313 = vdwg.mxu0
        %v314 = vmax.f32 %v308, 0.0
        %v315 = vmax.f32 %v310, 0.0
        %v318 = vcombine.low %v314, %v315
        %320 = vst [vmem:[%s222] sm:$0xff] %v318
        %s321 = smul.u32 2, %s14
        %p322 = scmp.lt.s32.totalorder %s321, 3
        %s323 = scalar_select %p322, %s321, 3
        %s324 = smul.addr %s323, 4
        %s325 = scalar_lea.vmem %s3, %s324
        // Predicated region
        $region71: #{decoder_forward.11} parent=65 // pred_check
          %p326 = pneg %p100
        $region72: #{decoder_forward.11} parent=65 // pred_check_branch
          %328 = sbr.rel (%p326) target = $region74
        $region73: #{decoder_forward.11} parent=65 // pred_region
          %s329 = smul.u32 2, %s14
        $region74: #{decoder_forward.11} parent=65 // pred_fallthru
          _
      $region66: #{decoder_forward.11} parent=5 // pred_fallthru
        _
      %p330 = scmp.le.s32.totalorder 2, %s9
      // Predicated region
      $region75: #{decoder_forward.11} parent=5 // pred_check
        %p331 = pneg %p330
      $region76: #{decoder_forward.11} parent=5 // pred_check_branch
        %333 = sbr.rel (%p331) target = $region78
      $region77: #{decoder_forward.11} parent=5 // pred_region
        %s334 = ssub.s32 %s9, 2
        // Predicated region
        $region79: #{decoder_forward.11} parent=77 // pred_check
          %p335 = pneg %p106
        $region80: #{decoder_forward.11} parent=77 // pred_check_branch
          %337 = sbr.rel (%p335) target = $region82
        $region81: #{decoder_forward.11} parent=77 // pred_region
          %s338 = smul.u32 2, %s15
          %p339 = scmp.lt.s32.totalorder %s338, 3
          %s340 = scalar_select %p339, %s338, 3
          %s341 = smul.addr %s340, 4
          %s342 = scalar_lea.vmem %s3, %s341
        $region82: #{decoder_forward.11} parent=77 // pred_fallthru
          _
      $region78: #{decoder_forward.11} parent=5 // pred_fallthru
        _
    $region6: #{decoder_forward.11} parent=1 // loop_footer
      %s13 = sadd.s32 1, %s9
    $region7: #{decoder_forward.11} parent=1 // loop_footer_branch
      %8 = sbr.rel target = $region3
    $region8: #{decoder_forward.11} parent=1 // loop_exit
      _

// kernel: decoder_forward.12
$region0: #{decoder_forward.12}
  #allocation0 [shape = 'u32[]', space=smem, size = 0x4, offset = 0x4, fixed_abs, tag = 'smem constant byte address 0x4 - core index']
  #allocation1 [shape = 'u32[144,128]{1,0:T(1,128)}', space=vmem, size = 0x12000, scoped, tag = 'internal scratch']
  %s0 = inlined_call_operand.vmem [shape: bf16[4,36], index: 0, kind: input, shape index: {}]
  %s1 = inlined_call_operand.vmem [shape: bf16[36,512], index: 1, kind: input, shape index: {}]
  %s2 = inlined_call_operand.vmem [shape: f32[4,1], index: 2, kind: input, shape index: {}]
  %s3 = inlined_call_operand.vmem [shape: f32[4,512], index: 3, kind: input, shape index: {}]
  %s4 = inlined_call_operand.vmem [shape: f32[4,512], index: 4, kind: input, shape index: {}]
  %s5 = inlined_call_operand.vmem [shape: f32[4,512], index: 5, kind: output, shape index: {}]
  %s6 = sld [smem:[#allocation0]]
  $region91: #{decoder_forward.12} parent=0
    _
  %s8 = ssub.s32 1, %s6
  %s9 = scalar_select 0, %s8, %s6
  $region1: #{decoder_forward.12} parent=0
    #allocation2 [shape = 'u8[40960]{0}', space=vmem, size = 0xa000, scoped, tag = 'input window, operand 1']
    loop: start=0, step=1, limit=4
    $region2: #{decoder_forward.12} parent=1 // loop_pre_header
      _
    $region3: #{decoder_forward.12} parent=1 // loop_header
      %s11 = sphi 0, %s15
      %p12 = scmp.ge.s32.totalorder %s11, 4
      %s19 = sphi 0, %s19
      %s21 = sphi 0, %s19
      %s22 = sphi 0, %s21
      %s36 = sphi 0, %s22
      %s42 = sphi 0, %s44
      %s45 = sphi 0, %s42
      %s46 = sphi 0, %s45
      %s62 = sphi 0, %s46
      %s66 = sphi 0, %s66
      %s68 = sphi 0, %s66
      %s69 = sphi 0, %s68
      %s83 = sphi 0, %s69
      %s89 = sphi 0, %s91
      %s92 = sphi 0, %s89
      %s93 = sphi 0, %s92
      %s109 = sphi 0, %s93
      %s115 = sphi 0, %s117
      %s118 = sphi 0, %s115
      %s119 = sphi 0, %s118
      %s135 = sphi 0, %s119
      %s141 = sphi 0, %s143
      %s144 = sphi 0, %s141
      %s145 = sphi 0, %s144
      %s161 = sphi 0, %s145
    $region4: #{decoder_forward.12} parent=1 // loop_header_branch
      %14 = sbr.rel (%p12) target = $region8
    $region5: #{decoder_forward.12} parent=1 // loop_body
      %s16 = ssub.s32 %s11, 1
      %s17 = ssub.s32 %s11, 2
      %s18 = sadd.s32 %s11, 1
      %s20 = sadd.s32 %s19, 1
      %p23 = scmp.eq.s32.totalorder %s11, 1
      %p24 = scmp.ne.s32.totalorder %s19, %s21
      %p25 = scmp.eq.s32.totalorder %s11, 0
      %p26 = por %p24, %p25
      %p27 = scmp.ne.s32.totalorder %s19, %s21
      %p28 = scmp.eq.s32.totalorder %s16, 1
      %p29 = por %p27, %p28
      %p30 = scmp.ne.s32.totalorder %s21, %s22
      %p31 = scmp.eq.s32.totalorder %s16, 0
      %p32 = por %p30, %p31
      %p33 = scmp.ne.s32.totalorder %s21, %s22
      %p34 = scmp.eq.s32.totalorder %s17, 1
      %p35 = por %p33, %p34
      %p37 = scmp.ne.s32.totalorder %s22, %s36
      %p38 = scmp.eq.s32.totalorder %s17, 0
      %p39 = por %p37, %p38
      %s40 = ssub.s32 %s11, %s18
      %p41 = scmp.eq.s32.totalorder %s40, 0
      %s43 = sadd.s32 %s42, 1
      %s44 = scalar_select %p41, %s42, %s43
      %p47 = pneg %p41
      %p48 = scmp.eq.s32.totalorder %s11, 1
      %p49 = por %p47, %p48
      %p50 = scmp.ne.s32.totalorder %s42, %s45
      %p51 = scmp.eq.s32.totalorder %s11, 0
      %p52 = por %p50, %p51
      %p53 = scmp.ne.s32.totalorder %s42, %s45
      %p54 = scmp.eq.s32.totalorder %s16, 1
      %p55 = por %p53, %p54
      %p56 = scmp.ne.s32.totalorder %s45, %s46
      %p57 = scmp.eq.s32.totalorder %s16, 0
      %p58 = por %p56, %p57
      %p59 = scmp.ne.s32.totalorder %s45, %s46
      %p60 = scmp.eq.s32.totalorder %s17, 1
      %p61 = por %p59, %p60
      %p63 = scmp.ne.s32.totalorder %s46, %s62
      %p64 = scmp.eq.s32.totalorder %s17, 0
      %p65 = por %p63, %p64
      %s67 = sadd.s32 %s66, 1
      %p70 = scmp.eq.s32.totalorder %s11, 1
      %p71 = scmp.ne.s32.totalorder %s66, %s68
      %p72 = scmp.eq.s32.totalorder %s11, 0
      %p73 = por %p71, %p72
      %p74 = scmp.ne.s32.totalorder %s66, %s68
      %p75 = scmp.eq.s32.totalorder %s16, 1
      %p76 = por %p74, %p75
      %p77 = scmp.ne.s32.totalorder %s68, %s69
      %p78 = scmp.eq.s32.totalorder %s16, 0
      %p79 = por %p77, %p78
      %p80 = scmp.ne.s32.totalorder %s68, %s69
      %p81 = scmp.eq.s32.totalorder %s17, 1
      %p82 = por %p80, %p81
      %p84 = scmp.ne.s32.totalorder %s69, %s83
      %p85 = scmp.eq.s32.totalorder %s17, 0
      %p86 = por %p84, %p85
      %s87 = ssub.s32 %s11, %s18
      %p88 = scmp.eq.s32.totalorder %s87, 0
      %s90 = sadd.s32 %s89, 1
      %s91 = scalar_select %p88, %s89, %s90
      %p94 = pneg %p88
      %p95 = scmp.eq.s32.totalorder %s11, 1
      %p96 = por %p94, %p95
      %p97 = scmp.ne.s32.totalorder %s89, %s92
      %p98 = scmp.eq.s32.totalorder %s11, 0
      %p99 = por %p97, %p98
      %p100 = scmp.ne.s32.totalorder %s89, %s92
      %p101 = scmp.eq.s32.totalorder %s16, 1
      %p102 = por %p100, %p101
      %p103 = scmp.ne.s32.totalorder %s92, %s93
      %p104 = scmp.eq.s32.totalorder %s16, 0
      %p105 = por %p103, %p104
      %p106 = scmp.ne.s32.totalorder %s92, %s93
      %p107 = scmp.eq.s32.totalorder %s17, 1
      %p108 = por %p106, %p107
      %p110 = scmp.ne.s32.totalorder %s93, %s109
      %p111 = scmp.eq.s32.totalorder %s17, 0
      %p112 = por %p110, %p111
      %s113 = ssub.s32 %s11, %s18
      %p114 = scmp.eq.s32.totalorder %s113, 0
      %s116 = sadd.s32 %s115, 1
      %s117 = scalar_select %p114, %s115, %s116
      %p120 = pneg %p114
      %p121 = scmp.eq.s32.totalorder %s11, 1
      %p122 = por %p120, %p121
      %p123 = scmp.ne.s32.totalorder %s115, %s118
      %p124 = scmp.eq.s32.totalorder %s11, 0
      %p125 = por %p123, %p124
      %p126 = scmp.ne.s32.totalorder %s115, %s118
      %p127 = scmp.eq.s32.totalorder %s16, 1
      %p128 = por %p126, %p127
      %p129 = scmp.ne.s32.totalorder %s118, %s119
      %p130 = scmp.eq.s32.totalorder %s16, 0
      %p131 = por %p129, %p130
      %p132 = scmp.ne.s32.totalorder %s118, %s119
      %p133 = scmp.eq.s32.totalorder %s17, 1
      %p134 = por %p132, %p133
      %p136 = scmp.ne.s32.totalorder %s119, %s135
      %p137 = scmp.eq.s32.totalorder %s17, 0
      %p138 = por %p136, %p137
      %s139 = ssub.s32 %s11, %s18
      %p140 = scmp.eq.s32.totalorder %s139, 0
      %s142 = sadd.s32 %s141, 1
      %s143 = scalar_select %p140, %s141, %s142
      %p146 = pneg %p140
      %p147 = scmp.eq.s32.totalorder %s11, 1
      %p148 = por %p146, %p147
      %p149 = scmp.ne.s32.totalorder %s141, %s144
      %p150 = scmp.eq.s32.totalorder %s11, 0
      %p151 = por %p149, %p150
      %p152 = scmp.ne.s32.totalorder %s141, %s144
      %p153 = scmp.eq.s32.totalorder %s16, 1
      %p154 = por %p152, %p153
      %p155 = scmp.ne.s32.totalorder %s144, %s145
      %p156 = scmp.eq.s32.totalorder %s16, 0
      %p157 = por %p155, %p156
      %p158 = scmp.ne.s32.totalorder %s144, %s145
      %p159 = scmp.eq.s32.totalorder %s17, 1
      %p160 = por %p158, %p159
      %p162 = scmp.ne.s32.totalorder %s145, %s161
      %p163 = scmp.eq.s32.totalorder %s17, 0
      %p164 = por %p162, %p163
      %p165 = scmp.le.s32.totalorder 1, %s11
      %p166 = scmp.lt.s32.totalorder %s11, 3
      %p167 = pnand %p165, %p166
      %p168 = pneg %p167
      // Predicated region
      $region9: #{decoder_forward.12} parent=5 // pred_check
        _
      $region10: #{decoder_forward.12} parent=5 // pred_check_branch
        %170 = sbr.rel (%p167) target = $region12
      $region11: #{decoder_forward.12} parent=5 // pred_region
        %s171 = ssub.s32 %s11, 1
        // Predicated region
        $region13: #{decoder_forward.12} parent=11 // pred_check
          %p172 = pneg %p32
        $region14: #{decoder_forward.12} parent=11 // pred_check_branch
          %174 = sbr.rel (%p172) target = $region16
        $region15: #{decoder_forward.12} parent=11 // pred_region
          _
        $region16: #{decoder_forward.12} parent=11 // pred_fallthru
          _
        // Predicated region
        $region17: #{decoder_forward.12} parent=11 // pred_check
          %p175 = pneg %p79
        $region18: #{decoder_forward.12} parent=11 // pred_check_branch
          %177 = sbr.rel (%p175) target = $region20
        $region19: #{decoder_forward.12} parent=11 // pred_region
          _
        $region20: #{decoder_forward.12} parent=11 // pred_fallthru
          _
      $region12: #{decoder_forward.12} parent=5 // pred_fallthru
        _
      %p178 = scmp.lt.s32.totalorder %s11, 2
      // Predicated region
      $region21: #{decoder_forward.12} parent=5 // pred_check
        %p179 = pneg %p178
      $region22: #{decoder_forward.12} parent=5 // pred_check_branch
        %181 = sbr.rel (%p179) target = $region24
      $region23: #{decoder_forward.12} parent=5 // pred_region
        // Predicated region
        $region25: #{decoder_forward.12} parent=23 // pred_check
          %p182 = pneg %p52
        $region26: #{decoder_forward.12} parent=23 // pred_check_branch
          %184 = sbr.rel (%p182) target = $region28
        $region27: #{decoder_forward.12} parent=23 // pred_region
          %s185 = sand.u32 %s42, 1
          %s186 = sand.u32 %s42, 1
          %s187 = smul.addr %s186, 40
          %s188 = scalar_lea.vmem [#allocation2], %s187
          %s189 = smul.u32 2, %s11
          %s190 = smul.addr %s189, 4
          %s191 = scalar_lea.vmem %s1, %s190
          // Predicated region
          $region29: #{decoder_forward.12} parent=27 // pred_check
            _
          $region30: #{decoder_forward.12} parent=27 // pred_check_branch
            %193 = sbr.rel (0) target = $region32
          $region31: #{decoder_forward.12} parent=27 // pred_region
            // Predicated region
            $region33: #{decoder_forward.12} parent=31 // pred_check
              _
            $region34: #{decoder_forward.12} parent=31 // pred_check_branch
              %195 = sbr.rel (0) target = $region36
            $region35: #{decoder_forward.12} parent=31 // pred_region
              // Predicated region
              $region48: #{decoder_forward.12} parent=35 // pred_check
                _
              $region49: #{decoder_forward.12} parent=35 // pred_check_branch
                %218 = sbr.rel (0) target = $region51
              $region50: #{decoder_forward.12} parent=35 // pred_region
                loop: start=0, step=1, limit=1
                $region52: #{decoder_forward.12} parent=50 // loop_pre_header
                  _
                $region53: #{decoder_forward.12} parent=50 // loop_header
                  %s220 = sphi 0, %s224
                  %p221 = scmp.ge.s32.totalorder %s220, 1
                  %s225 = sphi %s191, %s191
                  %s226 = sphi %s188, %s188
                $region54: #{decoder_forward.12} parent=50 // loop_header_branch
                  %223 = sbr.rel (%p221) target = $region58
                $region55: #{decoder_forward.12} parent=50 // loop_body
                  %v227 = vld [vmem:[%s225] sm:$0xff]
                  %228 = vst [vmem:[%s226] sm:$0xff] %v227
                  %v229 = vld [vmem:[%s225 + $0x10] sm:$0xff]
                  %230 = vst [vmem:[%s226 + $0x8] sm:$0xff] %v229
                  %v231 = vld [vmem:[%s225 + $0x20] sm:$0xff]
                  %232 = vst [vmem:[%s226 + $0x10] sm:$0xff] %v231
                  %v233 = vld [vmem:[%s225 + $0x30] sm:$0xff]
                  %234 = vst [vmem:[%s226 + $0x18] sm:$0xff] %v233
                  %v235 = vld [vmem:[%s225 + $0x40] sm:$0xff]
                  %236 = vst [vmem:[%s226 + $0x20] sm:$0xff] %v235
                $region56: #{decoder_forward.12} parent=50 // loop_footer
                  %s224 = sadd.s32 1, %s220
                $region57: #{decoder_forward.12} parent=50 // loop_footer_branch
                  %219 = sbr.rel target = $region53
                $region58: #{decoder_forward.12} parent=50 // loop_exit
                  _
              $region51: #{decoder_forward.12} parent=35 // pred_fallthru
                _
              // Predicated region
              $region59: #{decoder_forward.12} parent=35 // pred_check
                _
              $region60: #{decoder_forward.12} parent=35 // pred_check_branch
                %238 = sbr.rel target = $region62
              $region61: #{decoder_forward.12} parent=35 // pred_region
                _
              $region62: #{decoder_forward.12} parent=35 // pred_fallthru
                _
            $region36: #{decoder_forward.12} parent=31 // pred_fallthru
              _
            // Predicated region
            $region37: #{decoder_forward.12} parent=31 // pred_check
              _
            $region38: #{decoder_forward.12} parent=31 // pred_check_branch
              %197 = sbr.rel target = $region40
            $region39: #{decoder_forward.12} parent=31 // pred_region
              loop: start=0, step=1, limit=1
              $region41: #{decoder_forward.12} parent=39 // loop_pre_header
                _
              $region42: #{decoder_forward.12} parent=39 // loop_header
                %s200 = sphi 0, %s204
                %p201 = scmp.ge.s32.totalorder %s200, 1
                %s205 = sphi %s191, %s191
                %s206 = sphi %s188, %s188
              $region43: #{decoder_forward.12} parent=39 // loop_header_branch
                %203 = sbr.rel (%p201) target = $region47
              $region44: #{decoder_forward.12} parent=39 // loop_body
                %v207 = vld [vmem:[%s205] sm:$0xff]
                %208 = vst [vmem:[%s206] sm:$0xff] %v207
                %v209 = vld [vmem:[%s205 + $0x10] sm:$0xff]
                %210 = vst [vmem:[%s206 + $0x8] sm:$0xff] %v209
                %v211 = vld [vmem:[%s205 + $0x20] sm:$0xff]
                %212 = vst [vmem:[%s206 + $0x10] sm:$0xff] %v211
                %v213 = vld [vmem:[%s205 + $0x30] sm:$0xff]
                %214 = vst [vmem:[%s206 + $0x18] sm:$0xff] %v213
                %v215 = vld [vmem:[%s205 + $0x40] sm:$0xff]
                %216 = vst [vmem:[%s206 + $0x20] sm:$0xff] %v215
              $region45: #{decoder_forward.12} parent=39 // loop_footer
                %s204 = sadd.s32 1, %s200
              $region46: #{decoder_forward.12} parent=39 // loop_footer_branch
                %199 = sbr.rel target = $region42
              $region47: #{decoder_forward.12} parent=39 // loop_exit
                _
            $region40: #{decoder_forward.12} parent=31 // pred_fallthru
              _
          $region32: #{decoder_forward.12} parent=27 // pred_fallthru
            _
          %239 = vnop
        $region28: #{decoder_forward.12} parent=23 // pred_fallthru
          _
        // Predicated region
        $region63: #{decoder_forward.12} parent=23 // pred_check
          %p240 = pneg %p99
        $region64: #{decoder_forward.12} parent=23 // pred_check_branch
          %242 = sbr.rel (%p240) target = $region66
        $region65: #{decoder_forward.12} parent=23 // pred_region
          %s243 = smul.u32 2, %s11
          %p244 = scmp.lt.s32.totalorder %s243, 3
          %s245 = scalar_select %p244, %s243, 3
          %s246 = smul.addr %s245, 4
          %s247 = scalar_lea.vmem %s3, %s246
          %s248 = smul.u32 2, %s11
        $region66: #{decoder_forward.12} parent=23 // pred_fallthru
          _
        // Predicated region
        $region67: #{decoder_forward.12} parent=23 // pred_check
          %p249 = pneg %p125
        $region68: #{decoder_forward.12} parent=23 // pred_check_branch
          %251 = sbr.rel (%p249) target = $region70
        $region69: #{decoder_forward.12} parent=23 // pred_region
          %s252 = smul.u32 2, %s11
          %p253 = scmp.lt.s32.totalorder %s252, 3
          %s254 = scalar_select %p253, %s252, 3
          %s255 = smul.addr %s254, 4
          %s256 = scalar_lea.vmem %s4, %s255
          %s257 = smul.u32 2, %s11
        $region70: #{decoder_forward.12} parent=23 // pred_fallthru
          _
      $region24: #{decoder_forward.12} parent=5 // pred_fallthru
        _
      %p258 = scmp.le.s32.totalorder 1, %s11
      %p259 = scmp.lt.s32.totalorder %s11, 3
      %p260 = pnand %p258, %p259
      %p261 = pneg %p260
      // Predicated region
      $region71: #{decoder_forward.12} parent=5 // pred_check
        _
      $region72: #{decoder_forward.12} parent=5 // pred_check_branch
        %263 = sbr.rel (%p260) target = $region74
      $region73: #{decoder_forward.12} parent=5 // pred_region
        %s264 = ssub.s32 %s11, 1
        %s265 = sand.u32 %s45, 1
        %s266 = sand.u32 %s45, 1
        %s267 = smul.addr %s266, 40
        %s268 = scalar_lea.vmem [#allocation2], %s267
        // Predicated region
        $region75: #{decoder_forward.12} parent=73 // pred_check
          %p269 = pneg %p58
        $region76: #{decoder_forward.12} parent=73 // pred_check_branch
          %271 = sbr.rel (%p269) target = $region78
        $region77: #{decoder_forward.12} parent=73 // pred_region
          _
        $region78: #{decoder_forward.12} parent=73 // pred_fallthru
          _
        %p272 = pneg %p32
        %p273 = pneg %p29
        %s274 = sand.u32 %s45, 1
        %s275 = sand.u32 %s45, 1
        %s276 = smul.addr %s275, 40
        %s277 = scalar_lea.vmem [#allocation2], %s276
        %p278 = pneg %p58
        %p279 = pneg %p55
        %p280 = pneg %p79
        %p281 = pneg %p76
        %s282 = smul.u32 2, %s16
        %p283 = scmp.lt.s32.totalorder %s282, 3
        %s284 = scalar_select %p283, %s282, 3
        %s285 = smul.addr %s284, 4
        %s286 = scalar_lea.vmem %s3, %s285
        %p287 = pneg %p105
        %p288 = pneg %p102
        %s289 = smul.u32 2, %s16
        %p290 = scmp.lt.s32.totalorder %s289, 3
        %s291 = scalar_select %p290, %s289, 3
        %s292 = smul.addr %s291, 4
        %s293 = scalar_lea.vmem %s4, %s292
        %p294 = pneg %p131
        %p295 = pneg %p128
        %p296 = pneg %p157
        %p297 = pneg %p154
        %s298 = smul.u32 2, %s16
        %p299 = scmp.lt.s32.totalorder %s298, 3
        %s300 = scalar_select %p299, %s298, 3
        %s301 = smul.addr %s300, 4
        %s302 = scalar_lea.vmem %s5, %s301
        %s303 = smul.u32 2, %s16
        %s304 = smul.u32 2, %s16
        %p305 = scmp.lt.s32.totalorder %s304, 3
        %s306 = scalar_select %p305, %s304, 3
        %s307 = smul.addr %s306, 4
        %s308 = scalar_lea.vmem %s3, %s307
        %s309 = smul.u32 2, %s16
        %s310 = smul.u32 2, %s16
        %p311 = scmp.lt.s32.totalorder %s310, 3
        %s312 = scalar_select %p311, %s310, 3
        %s313 = smul.addr %s312, 4
        %s314 = scalar_lea.vmem %s4, %s313
        %s315 = smul.u32 2, %s16
        %s316 = smul.u32 2, %s16
        %p317 = scmp.lt.s32.totalorder %s316, 3
        %s318 = scalar_select %p317, %s316, 3
        %s319 = smul.addr %s318, 4
        %s320 = scalar_lea.vmem %s5, %s319
        %s321 = smul.u32 2, %s16
        %v323 = vld [vmem:[%s0] sm:$0x3]
        %v324 = vld [vmem:[%s268] sm:$0xff]
        %v325 = vld [vmem:[%s268 + $0x8] sm:$0xff]
        %v326 = vld [vmem:[%s268 + $0x10] sm:$0xff]
        %v327 = vld [vmem:[%s268 + $0x18] sm:$0xff]
        %v328 = vld [vmem:[%s268 + $0x20] sm:$0x33]
        %v329 = vld [vmem:[%s2] sm:$0xf]
        %331 = vset.pattern.permute.xlu0 0
        %332 = vperm.xlu0 %331, %v329
        %v333 = vpop.permute.xlu0 %332
        %v340 = vunpack.c.l.b16 %v324
        %v341 = vunpack.c.h.b16 %v324
        %v342 = vunpack.c.l.b16 %v325
        %v343 = vunpack.c.h.b16 %v325
        %v344 = vunpack.c.l.b16 %v326
        %v345 = vunpack.c.h.b16 %v326
        %v346 = vunpack.c.l.b16 %v327
        %v347 = vunpack.c.h.b16 %v327
        %v348 = vunpack.c.l.b16 %v328
        %v349 = vunpack.c.h.b16 %v328
        %v350 = vpack.c.b16 %v342, %v340
        %v351 = vpack.c.b16 %v343, %v341
        %v352 = vpack.c.b16 %v346, %v344
        %v353 = vpack.c.b16 %v347, %v345
        %v354 = vpack.c.b16 %v348, %v348
        %v355 = vpack.c.b16 %v349, %v349
        %vm360 = vcmask 293888
        %v362 = vsel %vm360, %v323, 0
        %vm364 = vcmask 1041408
        %v366 = vsel %vm364, %v354, 0
        %v369 = vsel %vm364, %v355, 0
        %371 = vmatprep.subr.bf16.mxu0 %v351
        %372 = vmatpush1.bf16.msra.mxu0 %v350
        %373 = vmatprep.subr.bf16.mxu0 %v353
        %374 = vmatpush1.bf16.msra.mxu0 %v352
        %375 = vmatprep.subr.bf16.mxu0 %v369
        %376 = vmatpush1.bf16.msra.mxu0 %v366
        %377 = vmatprep.subr.bf16.mxu0 0
        %378 = vmatpush1.bf16.msra.mxu0 0
        %379 = vmatprep.subr.bf16.mxu0 0
        %380 = vmatpush1.bf16.msra.mxu0 0
        %381 = vmatprep.subr.bf16.mxu0 0
        %382 = vmatpush1.bf16.msra.mxu0 0
        %383 = vmatprep.subr.bf16.mxu0 0
        %384 = vmatpush1.bf16.msra.mxu0 0
        %385 = vmatprep.subr.bf16.mxu0 0
        %386 = vmatpush1.bf16.msra.mxu0 0
        %387 = vmatprep.subr.bf16.mxu0 0
        %388 = vmatpush1.bf16.msra.mxu0 0
        %389 = vmatprep.subr.bf16.mxu0 0
        %390 = vmatpush1.bf16.msra.mxu0 0
        %391 = vmatprep.subr.bf16.mxu0 0
        %392 = vmatpush1.bf16.msra.mxu0 0
        %393 = vmatprep.subr.bf16.mxu0 0
        %394 = vmatpush1.bf16.msra.mxu0 0
        %395 = vmatprep.subr.bf16.mxu0 0
        %396 = vmatpush1.bf16.msra.mxu0 0
        %397 = vmatprep.subr.bf16.mxu0 0
        %398 = vmatpush1.bf16.msra.mxu0 0
        %399 = vmatprep.subr.bf16.mxu0 0
        %400 = vmatpush1.bf16.msra.mxu0 0
        %401 = vmatprep.subr.bf16.mxu0 0
        %402 = vmatpush1.bf16.msra.mxu0 0
        %403 = vmatprep.mubr.bf16.mxu0 0
        %404 = vmatmul.mubr.bf16.gmra.mrb[0].mxu0 %v362
        %v405 = vpop.f32.mrb[0].mxu0
        %v406 = vadd.f32 %v333, %v405
        %v407 = vpop.f32.mrb[0].mxu0
        %v408 = vadd.f32 %v333, %v407
        %v409 = vpop.f32.mrb[0].mxu0
        %v410 = vpop.f32.mrb[0].mxu0
        %411 = vdwg.mxu0
        %v412 = vld [vmem:[%s308] sm:$0xff]
        %v414 = vcombine.high %v412, %v412
        %v416 = vadd.f32 %v406, %v412
        %v417 = vadd.f32 %v408, %v414
        %v418 = vmax.f32 %v416, 0.0
        %v419 = vmax.f32 %v417, 0.0
        %v420 = vld [vmem:[%s314] sm:$0xff]
        %v422 = vcombine.high %v420, %v420
        %v424 = vadd.f32 %v418, %v420
        %v425 = vadd.f32 %v419, %v422
        %v428 = vcombine.low %v424, %v425
        %430 = vst [vmem:[%s320] sm:$0xff] %v428
        %s431 = smul.u32 2, %s16
        %p432 = scmp.lt.s32.totalorder %s431, 3
        %s433 = scalar_select %p432, %s431, 3
        %s434 = smul.addr %s433, 4
        %s435 = scalar_lea.vmem %s5, %s434
        // Predicated region
        $region79: #{decoder_forward.12} parent=73 // pred_check
          %p436 = pneg %p154
        $region80: #{decoder_forward.12} parent=73 // pred_check_branch
          %438 = sbr.rel (%p436) target = $region82
        $region81: #{decoder_forward.12} parent=73 // pred_region
          %s439 = smul.u32 2, %s16
        $region82: #{decoder_forward.12} parent=73 // pred_fallthru
          _
      $region74: #{decoder_forward.12} parent=5 // pred_fallthru
        _
      %p440 = scmp.le.s32.totalorder 2, %s11
      // Predicated region
      $region83: #{decoder_forward.12} parent=5 // pred_check
        %p441 = pneg %p440
      $region84: #{decoder_forward.12} parent=5 // pred_check_branch
        %443 = sbr.rel (%p441) target = $region86
      $region85: #{decoder_forward.12} parent=5 // pred_region
        %s444 = ssub.s32 %s11, 2
        // Predicated region
        $region87: #{decoder_forward.12} parent=85 // pred_check
          %p445 = pneg %p160
        $region88: #{decoder_forward.12} parent=85 // pred_check_branch
          %447 = sbr.rel (%p445) target = $region90
        $region89: #{decoder_forward.12} parent=85 // pred_region
          %s448 = smul.u32 2, %s17
          %p449 = scmp.lt.s32.totalorder %s448, 3
          %s450 = scalar_select %p449, %s448, 3
          %s451 = smul.addr %s450, 4
          %s452 = scalar_lea.vmem %s5, %s451
        $region90: #{decoder_forward.12} parent=85 // pred_fallthru
          _
      $region86: #{decoder_forward.12} parent=5 // pred_fallthru
        _
    $region6: #{decoder_forward.12} parent=1 // loop_footer
      %s15 = sadd.s32 1, %s11
    $region7: #{decoder_forward.12} parent=1 // loop_footer_branch
      %10 = sbr.rel target = $region3
    $region8: #{decoder_forward.12} parent=1 // loop_exit
      _

// kernel: decoder_forward.13
$region0: #{decoder_forward.13}
  #allocation0 [shape = 'u32[]', space=smem, size = 0x4, offset = 0x4, fixed_abs, tag = 'smem constant byte address 0x4 - core index']
  #allocation1 [shape = 'u32[144,128]{1,0:T(1,128)}', space=vmem, size = 0x12000, scoped, tag = 'internal scratch']
  %s0 = inlined_call_operand.vmem [shape: bf16[12,36], index: 0, kind: input, shape index: {}]
  %s1 = inlined_call_operand.vmem [shape: bf16[36,512], index: 1, kind: input, shape index: {}]
  %s2 = inlined_call_operand.vmem [shape: f32[12,1], index: 2, kind: input, shape index: {}]
  %s3 = inlined_call_operand.vmem [shape: f32[12,512], index: 3, kind: output, shape index: {}]
  %s4 = sld [smem:[#allocation0]]
  $region102: #{decoder_forward.13} parent=0
    _
  %s6 = ssub.s32 1, %s4
  %s7 = scalar_select 0, %s6, %s4
  $region1: #{decoder_forward.13} parent=0
    #allocation2 [shape = 'u8[40960]{0}', space=vmem, size = 0xa000, scoped, tag = 'input window, operand 1']
    #allocation3 [shape = 'u8[32768]{0}', space=vmem, size = 0x8000, scoped, tag = 'output window, operand 0']
    loop: start=0, step=1, limit=4
    $region2: #{decoder_forward.13} parent=1 // loop_pre_header
      _
    $region3: #{decoder_forward.13} parent=1 // loop_header
      %s9 = sphi 0, %s13
      %p10 = scmp.ge.s32.totalorder %s9, 4
      %s17 = sphi 0, %s17
      %s19 = sphi 0, %s17
      %s20 = sphi 0, %s19
      %s34 = sphi 0, %s20
      %s40 = sphi 0, %s42
      %s43 = sphi 0, %s40
      %s44 = sphi 0, %s43
      %s60 = sphi 0, %s44
      %s64 = sphi 0, %s64
      %s66 = sphi 0, %s64
      %s67 = sphi 0, %s66
      %s81 = sphi 0, %s67
      %s87 = sphi 0, %s89
      %s90 = sphi 0, %s87
      %s91 = sphi 0, %s90
      %s107 = sphi 0, %s91
    $region4: #{decoder_forward.13} parent=1 // loop_header_branch
      %12 = sbr.rel (%p10) target = $region8
    $region5: #{decoder_forward.13} parent=1 // loop_body
      %s14 = ssub.s32 %s9, 1
      %s15 = ssub.s32 %s9, 2
      %s16 = sadd.s32 %s9, 1
      %s18 = sadd.s32 %s17, 1
      %p21 = scmp.eq.s32.totalorder %s9, 1
      %p22 = scmp.ne.s32.totalorder %s17, %s19
      %p23 = scmp.eq.s32.totalorder %s9, 0
      %p24 = por %p22, %p23
      %p25 = scmp.ne.s32.totalorder %s17, %s19
      %p26 = scmp.eq.s32.totalorder %s14, 1
      %p27 = por %p25, %p26
      %p28 = scmp.ne.s32.totalorder %s19, %s20
      %p29 = scmp.eq.s32.totalorder %s14, 0
      %p30 = por %p28, %p29
      %p31 = scmp.ne.s32.totalorder %s19, %s20
      %p32 = scmp.eq.s32.totalorder %s15, 1
      %p33 = por %p31, %p32
      %p35 = scmp.ne.s32.totalorder %s20, %s34
      %p36 = scmp.eq.s32.totalorder %s15, 0
      %p37 = por %p35, %p36
      %s38 = ssub.s32 %s9, %s16
      %p39 = scmp.eq.s32.totalorder %s38, 0
      %s41 = sadd.s32 %s40, 1
      %s42 = scalar_select %p39, %s40, %s41
      %p45 = pneg %p39
      %p46 = scmp.eq.s32.totalorder %s9, 1
      %p47 = por %p45, %p46
      %p48 = scmp.ne.s32.totalorder %s40, %s43
      %p49 = scmp.eq.s32.totalorder %s9, 0
      %p50 = por %p48, %p49
      %p51 = scmp.ne.s32.totalorder %s40, %s43
      %p52 = scmp.eq.s32.totalorder %s14, 1
      %p53 = por %p51, %p52
      %p54 = scmp.ne.s32.totalorder %s43, %s44
      %p55 = scmp.eq.s32.totalorder %s14, 0
      %p56 = por %p54, %p55
      %p57 = scmp.ne.s32.totalorder %s43, %s44
      %p58 = scmp.eq.s32.totalorder %s15, 1
      %p59 = por %p57, %p58
      %p61 = scmp.ne.s32.totalorder %s44, %s60
      %p62 = scmp.eq.s32.totalorder %s15, 0
      %p63 = por %p61, %p62
      %s65 = sadd.s32 %s64, 1
      %p68 = scmp.eq.s32.totalorder %s9, 1
      %p69 = scmp.ne.s32.totalorder %s64, %s66
      %p70 = scmp.eq.s32.totalorder %s9, 0
      %p71 = por %p69, %p70
      %p72 = scmp.ne.s32.totalorder %s64, %s66
      %p73 = scmp.eq.s32.totalorder %s14, 1
      %p74 = por %p72, %p73
      %p75 = scmp.ne.s32.totalorder %s66, %s67
      %p76 = scmp.eq.s32.totalorder %s14, 0
      %p77 = por %p75, %p76
      %p78 = scmp.ne.s32.totalorder %s66, %s67
      %p79 = scmp.eq.s32.totalorder %s15, 1
      %p80 = por %p78, %p79
      %p82 = scmp.ne.s32.totalorder %s67, %s81
      %p83 = scmp.eq.s32.totalorder %s15, 0
      %p84 = por %p82, %p83
      %s85 = ssub.s32 %s9, %s16
      %p86 = scmp.eq.s32.totalorder %s85, 0
      %s88 = sadd.s32 %s87, 1
      %s89 = scalar_select %p86, %s87, %s88
      %p92 = pneg %p86
      %p93 = scmp.eq.s32.totalorder %s9, 1
      %p94 = por %p92, %p93
      %p95 = scmp.ne.s32.totalorder %s87, %s90
      %p96 = scmp.eq.s32.totalorder %s9, 0
      %p97 = por %p95, %p96
      %p98 = scmp.ne.s32.totalorder %s87, %s90
      %p99 = scmp.eq.s32.totalorder %s14, 1
      %p100 = por %p98, %p99
      %p101 = scmp.ne.s32.totalorder %s90, %s91
      %p102 = scmp.eq.s32.totalorder %s14, 0
      %p103 = por %p101, %p102
      %p104 = scmp.ne.s32.totalorder %s90, %s91
      %p105 = scmp.eq.s32.totalorder %s15, 1
      %p106 = por %p104, %p105
      %p108 = scmp.ne.s32.totalorder %s91, %s107
      %p109 = scmp.eq.s32.totalorder %s15, 0
      %p110 = por %p108, %p109
      %p111 = scmp.le.s32.totalorder 1, %s9
      %p112 = scmp.lt.s32.totalorder %s9, 3
      %p113 = pnand %p111, %p112
      %p114 = pneg %p113
      // Predicated region
      $region9: #{decoder_forward.13} parent=5 // pred_check
        _
      $region10: #{decoder_forward.13} parent=5 // pred_check_branch
        %116 = sbr.rel (%p113) target = $region12
      $region11: #{decoder_forward.13} parent=5 // pred_region
        %s117 = ssub.s32 %s9, 1
        // Predicated region
        $region13: #{decoder_forward.13} parent=11 // pred_check
          %p118 = pneg %p30
        $region14: #{decoder_forward.13} parent=11 // pred_check_branch
          %120 = sbr.rel (%p118) target = $region16
        $region15: #{decoder_forward.13} parent=11 // pred_region
          _
        $region16: #{decoder_forward.13} parent=11 // pred_fallthru
          _
        // Predicated region
        $region17: #{decoder_forward.13} parent=11 // pred_check
          %p121 = pneg %p77
        $region18: #{decoder_forward.13} parent=11 // pred_check_branch
          %123 = sbr.rel (%p121) target = $region20
        $region19: #{decoder_forward.13} parent=11 // pred_region
          _
        $region20: #{decoder_forward.13} parent=11 // pred_fallthru
          _
      $region12: #{decoder_forward.13} parent=5 // pred_fallthru
        _
      %p124 = scmp.lt.s32.totalorder %s9, 2
      // Predicated region
      $region21: #{decoder_forward.13} parent=5 // pred_check
        %p125 = pneg %p124
      $region22: #{decoder_forward.13} parent=5 // pred_check_branch
        %127 = sbr.rel (%p125) target = $region24
      $region23: #{decoder_forward.13} parent=5 // pred_region
        // Predicated region
        $region25: #{decoder_forward.13} parent=23 // pred_check
          %p128 = pneg %p50
        $region26: #{decoder_forward.13} parent=23 // pred_check_branch
          %130 = sbr.rel (%p128) target = $region28
        $region27: #{decoder_forward.13} parent=23 // pred_region
          %s131 = sand.u32 %s40, 1
          %s132 = sand.u32 %s40, 1
          %s133 = smul.addr %s132, 40
          %s134 = scalar_lea.vmem [#allocation2], %s133
          %s135 = smul.u32 2, %s9
          %s136 = smul.addr %s135, 4
          %s137 = scalar_lea.vmem %s1, %s136
          // Predicated region
          $region29: #{decoder_forward.13} parent=27 // pred_check
            _
          $region30: #{decoder_forward.13} parent=27 // pred_check_branch
            %139 = sbr.rel (0) target = $region32
          $region31: #{decoder_forward.13} parent=27 // pred_region
            // Predicated region
            $region33: #{decoder_forward.13} parent=31 // pred_check
              _
            $region34: #{decoder_forward.13} parent=31 // pred_check_branch
              %141 = sbr.rel (0) target = $region36
            $region35: #{decoder_forward.13} parent=31 // pred_region
              // Predicated region
              $region48: #{decoder_forward.13} parent=35 // pred_check
                _
              $region49: #{decoder_forward.13} parent=35 // pred_check_branch
                %164 = sbr.rel (0) target = $region51
              $region50: #{decoder_forward.13} parent=35 // pred_region
                loop: start=0, step=1, limit=1
                $region52: #{decoder_forward.13} parent=50 // loop_pre_header
                  _
                $region53: #{decoder_forward.13} parent=50 // loop_header
                  %s166 = sphi 0, %s170
                  %p167 = scmp.ge.s32.totalorder %s166, 1
                  %s171 = sphi %s137, %s137
                  %s172 = sphi %s134, %s134
                $region54: #{decoder_forward.13} parent=50 // loop_header_branch
                  %169 = sbr.rel (%p167) target = $region58
                $region55: #{decoder_forward.13} parent=50 // loop_body
                  %v173 = vld [vmem:[%s171] sm:$0xff]
                  %174 = vst [vmem:[%s172] sm:$0xff] %v173
                  %v175 = vld [vmem:[%s171 + $0x10] sm:$0xff]
                  %176 = vst [vmem:[%s172 + $0x8] sm:$0xff] %v175
                  %v177 = vld [vmem:[%s171 + $0x20] sm:$0xff]
                  %178 = vst [vmem:[%s172 + $0x10] sm:$0xff] %v177
                  %v179 = vld [vmem:[%s171 + $0x30] sm:$0xff]
                  %180 = vst [vmem:[%s172 + $0x18] sm:$0xff] %v179
                  %v181 = vld [vmem:[%s171 + $0x40] sm:$0xff]
                  %182 = vst [vmem:[%s172 + $0x20] sm:$0xff] %v181
                $region56: #{decoder_forward.13} parent=50 // loop_footer
                  %s170 = sadd.s32 1, %s166
                $region57: #{decoder_forward.13} parent=50 // loop_footer_branch
                  %165 = sbr.rel target = $region53
                $region58: #{decoder_forward.13} parent=50 // loop_exit
                  _
              $region51: #{decoder_forward.13} parent=35 // pred_fallthru
                _
              // Predicated region
              $region59: #{decoder_forward.13} parent=35 // pred_check
                _
              $region60: #{decoder_forward.13} parent=35 // pred_check_branch
                %184 = sbr.rel target = $region62
              $region61: #{decoder_forward.13} parent=35 // pred_region
                _
              $region62: #{decoder_forward.13} parent=35 // pred_fallthru
                _
            $region36: #{decoder_forward.13} parent=31 // pred_fallthru
              _
            // Predicated region
            $region37: #{decoder_forward.13} parent=31 // pred_check
              _
            $region38: #{decoder_forward.13} parent=31 // pred_check_branch
              %143 = sbr.rel target = $region40
            $region39: #{decoder_forward.13} parent=31 // pred_region
              loop: start=0, step=1, limit=1
              $region41: #{decoder_forward.13} parent=39 // loop_pre_header
                _
              $region42: #{decoder_forward.13} parent=39 // loop_header
                %s146 = sphi 0, %s150
                %p147 = scmp.ge.s32.totalorder %s146, 1
                %s151 = sphi %s137, %s137
                %s152 = sphi %s134, %s134
              $region43: #{decoder_forward.13} parent=39 // loop_header_branch
                %149 = sbr.rel (%p147) target = $region47
              $region44: #{decoder_forward.13} parent=39 // loop_body
                %v153 = vld [vmem:[%s151] sm:$0xff]
                %154 = vst [vmem:[%s152] sm:$0xff] %v153
                %v155 = vld [vmem:[%s151 + $0x10] sm:$0xff]
                %156 = vst [vmem:[%s152 + $0x8] sm:$0xff] %v155
                %v157 = vld [vmem:[%s151 + $0x20] sm:$0xff]
                %158 = vst [vmem:[%s152 + $0x10] sm:$0xff] %v157
                %v159 = vld [vmem:[%s151 + $0x30] sm:$0xff]
                %160 = vst [vmem:[%s152 + $0x18] sm:$0xff] %v159
                %v161 = vld [vmem:[%s151 + $0x40] sm:$0xff]
                %162 = vst [vmem:[%s152 + $0x20] sm:$0xff] %v161
              $region45: #{decoder_forward.13} parent=39 // loop_footer
                %s150 = sadd.s32 1, %s146
              $region46: #{decoder_forward.13} parent=39 // loop_footer_branch
                %145 = sbr.rel target = $region42
              $region47: #{decoder_forward.13} parent=39 // loop_exit
                _
            $region40: #{decoder_forward.13} parent=31 // pred_fallthru
              _
          $region32: #{decoder_forward.13} parent=27 // pred_fallthru
            _
          %185 = vnop
        $region28: #{decoder_forward.13} parent=23 // pred_fallthru
          _
      $region24: #{decoder_forward.13} parent=5 // pred_fallthru
        _
      %p186 = scmp.le.s32.totalorder 1, %s9
      %p187 = scmp.lt.s32.totalorder %s9, 3
      %p188 = pnand %p186, %p187
      %p189 = pneg %p188
      // Predicated region
      $region63: #{decoder_forward.13} parent=5 // pred_check
        _
      $region64: #{decoder_forward.13} parent=5 // pred_check_branch
        %191 = sbr.rel (%p188) target = $region66
      $region65: #{decoder_forward.13} parent=5 // pred_region
        %s192 = ssub.s32 %s9, 1
        %s193 = sand.u32 %s43, 1
        %s194 = sand.u32 %s43, 1
        %s195 = smul.addr %s194, 40
        %s196 = scalar_lea.vmem [#allocation2], %s195
        // Predicated region
        $region67: #{decoder_forward.13} parent=65 // pred_check
          %p197 = pneg %p56
        $region68: #{decoder_forward.13} parent=65 // pred_check_branch
          %199 = sbr.rel (%p197) target = $region70
        $region69: #{decoder_forward.13} parent=65 // pred_region
          _
        $region70: #{decoder_forward.13} parent=65 // pred_fallthru
          _
        %p200 = pneg %p30
        %p201 = pneg %p27
        %s202 = sand.u32 %s43, 1
        %s203 = sand.u32 %s43, 1
        %s204 = smul.addr %s203, 40
        %s205 = scalar_lea.vmem [#allocation2], %s204
        %p206 = pneg %p56
        %p207 = pneg %p53
        %p208 = pneg %p77
        %p209 = pneg %p74
        %p210 = pneg %p103
        %p211 = pneg %p100
        %s212 = sand.u32 %s90, 1
        %s213 = sand.u32 %s90, 1
        %s214 = smul.addr %s213, 32
        %s215 = scalar_lea.vmem [#allocation3], %s214
        %s216 = smul.u32 2, %s14
        %s217 = smul.u32 2, %s14
        %v219 = vld [vmem:[%s0] sm:$0xf]
        %v220 = vld [vmem:[%s0 + $0x4] sm:$0x3]
        %v221 = vld [vmem:[%s196] sm:$0xff]
        %v222 = vld [vmem:[%s196 + $0x8] sm:$0xff]
        %v223 = vld [vmem:[%s196 + $0x10] sm:$0xff]
        %v224 = vld [vmem:[%s196 + $0x18] sm:$0xff]
        %v225 = vld [vmem:[%s196 + $0x20] sm:$0x33]
        %v226 = vld [vmem:[%s2] sm:$0xff]
        %v227 = vld [vmem:[%s2 + $0x8] sm:$0xf]
        %229 = vset.pattern.permute.xlu0 0
        %230 = vperm.xlu0 %229, %v226
        %v231 = vpop.permute.xlu0 %230
        %234 = vset.pattern.permute.xlu0 0
        %235 = vperm.xlu0 %234, %v227
        %v236 = vpop.permute.xlu0 %235
        %v240 = vunpack.c.l.b16 %v219
        %v241 = vunpack.c.l.b16 %v220
        %v242 = vpack.c.b16 %v241, %v240
        %v248 = vunpack.c.l.b16 %v221
        %v249 = vunpack.c.h.b16 %v221
        %v250 = vunpack.c.l.b16 %v222
        %v251 = vunpack.c.h.b16 %v222
        %v252 = vunpack.c.l.b16 %v223
        %v253 = vunpack.c.h.b16 %v223
        %v254 = vunpack.c.l.b16 %v224
        %v255 = vunpack.c.h.b16 %v224
        %v256 = vunpack.c.l.b16 %v225
        %v257 = vunpack.c.h.b16 %v225
        %v258 = vpack.c.b16 %v250, %v248
        %v259 = vpack.c.b16 %v251, %v249
        %v260 = vpack.c.b16 %v254, %v252
        %v261 = vpack.c.b16 %v255, %v253
        %v262 = vpack.c.b16 %v256, %v256
        %v263 = vpack.c.b16 %v257, %v257
        %vm268 = vcmask 293888
        %v270 = vsel %vm268, %v242, 0
        %vm272 = vcmask 1041408
        %v274 = vsel %vm272, %v262, 0
        %v277 = vsel %vm272, %v263, 0
        %279 = vmatprep.subr.bf16.mxu0 %v259
        %280 = vmatpush1.bf16.msra.mxu0 %v258
        %281 = vmatprep.subr.bf16.mxu0 %v261
        %282 = vmatpush1.bf16.msra.mxu0 %v260
        %283 = vmatprep.subr.bf16.mxu0 %v277
        %284 = vmatpush1.bf16.msra.mxu0 %v274
        %285 = vmatprep.subr.bf16.mxu0 0
        %286 = vmatpush1.bf16.msra.mxu0 0
        %287 = vmatprep.subr.bf16.mxu0 0
        %288 = vmatpush1.bf16.msra.mxu0 0
        %289 = vmatprep.subr.bf16.mxu0 0
        %290 = vmatpush1.bf16.msra.mxu0 0
        %291 = vmatprep.subr.bf16.mxu0 0
        %292 = vmatpush1.bf16.msra.mxu0 0
        %293 = vmatprep.subr.bf16.mxu0 0
        %294 = vmatpush1.bf16.msra.mxu0 0
        %295 = vmatprep.subr.bf16.mxu0 0
        %296 = vmatpush1.bf16.msra.mxu0 0
        %297 = vmatprep.subr.bf16.mxu0 0
        %298 = vmatpush1.bf16.msra.mxu0 0
        %299 = vmatprep.subr.bf16.mxu0 0
        %300 = vmatpush1.bf16.msra.mxu0 0
        %301 = vmatprep.subr.bf16.mxu0 0
        %302 = vmatpush1.bf16.msra.mxu0 0
        %303 = vmatprep.subr.bf16.mxu0 0
        %304 = vmatpush1.bf16.msra.mxu0 0
        %305 = vmatprep.subr.bf16.mxu0 0
        %306 = vmatpush1.bf16.msra.mxu0 0
        %307 = vmatprep.subr.bf16.mxu0 0
        %308 = vmatpush1.bf16.msra.mxu0 0
        %309 = vmatprep.subr.bf16.mxu0 0
        %310 = vmatpush1.bf16.msra.mxu0 0
        %311 = vmatprep.mubr.bf16.mxu0 0
        %312 = vmatmul.mubr.bf16.gmra.mrb[0].mxu0 %v270
        %v313 = vpop.f32.mrb[0].mxu0
        %v314 = vadd.f32 %v231, %v313
        %v315 = vpop.f32.mrb[0].mxu0
        %v316 = vadd.f32 %v231, %v315
        %v317 = vpop.f32.mrb[0].mxu0
        %v318 = vadd.f32 %v236, %v317
        %v319 = vpop.f32.mrb[0].mxu0
        %v320 = vadd.f32 %v236, %v319
        %321 = vdwg.mxu0
        %v322 = vmax.f32 %v314, 0.0
        %v323 = vmax.f32 %v316, 0.0
        %v324 = vmax.f32 %v318, 0.0
        %v325 = vmax.f32 %v320, 0.0
        %326 = vst [vmem:[%s215] sm:$0xff] %v322
        %327 = vst [vmem:[%s215 + $0x8] sm:$0xff] %v323
        %328 = vst [vmem:[%s215 + $0x10] sm:$0xf] %v324
        %329 = vst [vmem:[%s215 + $0x18] sm:$0xf] %v325
        %s330 = sand.u32 %s90, 1
        %s331 = sand.u32 %s90, 1
        %s332 = smul.addr %s331, 32
        %s333 = scalar_lea.vmem [#allocation3], %s332
        // Predicated region
        $region71: #{decoder_forward.13} parent=65 // pred_check
          %p334 = pneg %p100
        $region72: #{decoder_forward.13} parent=65 // pred_check_branch
          %336 = sbr.rel (%p334) target = $region74
        $region73: #{decoder_forward.13} parent=65 // pred_region
          %s337 = smul.u32 2, %s14
          %s338 = smul.addr %s337, 8
          %s339 = scalar_lea.vmem %s3, %s338
          // Predicated region
          $region75: #{decoder_forward.13} parent=73 // pred_check
            _
          $region76: #{decoder_forward.13} parent=73 // pred_check_branch
            %341 = sbr.rel (0) target = $region78
          $region77: #{decoder_forward.13} parent=73 // pred_region
            // Predicated region
            $region79: #{decoder_forward.13} parent=77 // pred_check
              _
            $region80: #{decoder_forward.13} parent=77 // pred_check_branch
              %343 = sbr.rel (0) target = $region82
            $region81: #{decoder_forward.13} parent=77 // pred_region
              loop: start=0, step=1, limit=1
              $region83: #{decoder_forward.13} parent=81 // loop_pre_header
                _
              $region84: #{decoder_forward.13} parent=81 // loop_header
                %s345 = sphi 0, %s349
                %p346 = scmp.ge.s32.totalorder %s345, 1
                %s350 = sphi %s333, %s333
                %s351 = sphi %s339, %s339
              $region85: #{decoder_forward.13} parent=81 // loop_header_branch
                %348 = sbr.rel (%p346) target = $region89
              $region86: #{decoder_forward.13} parent=81 // loop_body
                %v352 = vld [vmem:[%s350] sm:$0xff]
                %353 = vst [vmem:[%s351] sm:$0xff] %v352
                %v354 = vld [vmem:[%s350 + $0x8] sm:$0xff]
                %355 = vst [vmem:[%s351 + $0x8] sm:$0xff] %v354
                %v356 = vld [vmem:[%s350 + $0x10] sm:$0xff]
                %357 = vst [vmem:[%s351 + $0x20] sm:$0xff] %v356
                %v358 = vld [vmem:[%s350 + $0x18] sm:$0xff]
                %359 = vst [vmem:[%s351 + $0x28] sm:$0xff] %v358
              $region87: #{decoder_forward.13} parent=81 // loop_footer
                %s349 = sadd.s32 1, %s345
              $region88: #{decoder_forward.13} parent=81 // loop_footer_branch
                %344 = sbr.rel target = $region84
              $region89: #{decoder_forward.13} parent=81 // loop_exit
                _
            $region82: #{decoder_forward.13} parent=77 // pred_fallthru
              _
            // Predicated region
            $region90: #{decoder_forward.13} parent=77 // pred_check
              _
            $region91: #{decoder_forward.13} parent=77 // pred_check_branch
              %361 = sbr.rel target = $region93
            $region92: #{decoder_forward.13} parent=77 // pred_region
              _
            $region93: #{decoder_forward.13} parent=77 // pred_fallthru
              _
          $region78: #{decoder_forward.13} parent=73 // pred_fallthru
            _
          %362 = vnop
        $region74: #{decoder_forward.13} parent=65 // pred_fallthru
          _
      $region66: #{decoder_forward.13} parent=5 // pred_fallthru
        _
      %p363 = scmp.le.s32.totalorder 2, %s9
      // Predicated region
      $region94: #{decoder_forward.13} parent=5 // pred_check
        %p364 = pneg %p363
      $region95: #{decoder_forward.13} parent=5 // pred_check_branch
        %366 = sbr.rel (%p364) target = $region97
      $region96: #{decoder_forward.13} parent=5 // pred_region
        %s367 = ssub.s32 %s9, 2
        // Predicated region
        $region98: #{decoder_forward.13} parent=96 // pred_check
          %p368 = pneg %p106
        $region99: #{decoder_forward.13} parent=96 // pred_check_branch
          %370 = sbr.rel (%p368) target = $region101
        $region100: #{decoder_forward.13} parent=96 // pred_region
          %s371 = sand.u32 %s91, 1
          %s372 = sand.u32 %s91, 1
          %s373 = smul.addr %s372, 32
          %s374 = scalar_lea.vmem [#allocation3], %s373
        $region101: #{decoder_forward.13} parent=96 // pred_fallthru
          _
      $region97: #{decoder_forward.13} parent=5 // pred_fallthru
        _
    $region6: #{decoder_forward.13} parent=1 // loop_footer
      %s13 = sadd.s32 1, %s9
    $region7: #{decoder_forward.13} parent=1 // loop_footer_branch
      %8 = sbr.rel target = $region3
    $region8: #{decoder_forward.13} parent=1 // loop_exit
      _

</llo_original>
